<compile_context>
chip_gen: v7x
topology: tpu7x:2x2x1
jax: 0.10.0
libtpu: 0.0.40
codegen_flags: <defaults>
</compile_context>

<pallas_src>
import functools

import jax
import jax.numpy as jnp
from jax import lax
from jax.experimental import pallas as pl
from jax.experimental.pallas import tpu as pltpu


# ---------------------------------------------------------------------------
# Fused kernel
# ---------------------------------------------------------------------------
def _fused_kernel(x_ref, w1_ref, b1_ref, pool_ref, m1_ref, w2_ref, b2_ref,
                  m2_ref, wd_ref, bd_ref, u_ref, tau_ref, o_ref,
                  xq, yq, zq, *, H, W):
    """One batch element, fully in VMEM.

    x_ref    : (1, Ci, H*W)            flattened NCHW input
    w1_ref   : (Co1, 9*Ci)             tap-folded conv1 weights
    b1_ref   : (Co1, 1)
    pool_ref : (H*W, Hh*Wh)            constant 0/0.25 avg-pool matrix
    m1_ref   : (2, H*W)   f32 {0,1}    row0: col!=0 , row1: col!=W-1
    w2_ref   : (Co2, 9*Co1)            tap-folded conv2 weights
    b2_ref   : (Co2, 1)
    m2_ref   : (2, Hh*Wh)              edge masks at half resolution
    wd_ref   : (2, 9*Co2)              per-phase folded ConvTranspose weights
    bd_ref   : (2, 1)
    u_ref    : (1, 2, 2, 2, Hh*Wh)     gumbel uniforms, phase layout (a,b,c,q)
    tau_ref  : (1,) in SMEM
    o_ref    : (1, 2, 2, 2, Hh*Wh)     output in phase layout
    xq, yq, zq : VMEM scratch (row-padded flat tiles)
    """
    f32 = jnp.float32
    Hh, Wh = H // 2, W // 2
    N1, N2 = H * W, Hh * Wh
    Ci = x_ref.shape[1]
    Co1 = w1_ref.shape[0]
    Co2 = w2_ref.shape[0]

    m1l, m1r = m1_ref[0:1, :], m1_ref[1:2, :]
    m2l, m2r = m2_ref[0:1, :], m2_ref[1:2, :]

    def im2col(buf_ref, n, w, mask_l, mask_r):
        # buf_ref holds the image flattened row-major with (w+1) zeros on each
        # side; tap (kh,kw) is then a static lane-shifted slice + edge mask.
        pieces = []
        for kh in range(3):
            for kw in range(3):
                s = kh * w + kw
                patch = buf_ref[:, s:s + n]
                if kw == 0:
                    patch = patch * mask_l
                elif kw == 2:
                    patch = patch * mask_r
                pieces.append(patch)
        return jnp.concatenate(pieces, axis=0)          # (9*C, n)

    # ---- Conv2d(Ci, Co1, 3, 1, 1) + ReLU : single tap-folded MXU matmul ----
    xq[...] = jnp.zeros(xq.shape, f32)
    xq[:, W + 1:W + 1 + N1] = x_ref[0]
    a1 = im2col(xq, N1, W, m1l, m1r)                    # (9*Ci, N1)
    y1 = jnp.maximum(
        jnp.dot(w1_ref[...], a1, preferred_element_type=f32) + b1_ref[...],
        0.0)                                            # (Co1, N1)

    # ---- AvgPool2d(2) as one lane-dense matmul with a constant matrix ----
    pooled = jnp.dot(y1, pool_ref[...], preferred_element_type=f32)   # (Co1, N2)

    # ---- Conv2d(Co1, Co2, 3, 1, 1) + ReLU ----
    yq[...] = jnp.zeros(yq.shape, f32)
    yq[:, Wh + 1:Wh + 1 + N2] = pooled
    a2 = im2col(yq, N2, Wh, m2l, m2r)                   # (9*Co1, N2)
    y2 = jnp.maximum(
        jnp.dot(w2_ref[...], a2, preferred_element_type=f32) + b2_ref[...],
        0.0)                                            # (Co2, N2)

    # ---- ConvTranspose2d(Co2, 2, 3, stride 2, pad 1, output_padding 1) ----
    # 4-phase (output parity) decomposition: no 75%-zero dilated buffer.
    zq[...] = jnp.zeros(zq.shape, f32)
    zq[:, 0:N2] = y2
    center = y2
    right = zq[:, 1:N2 + 1] * m2r                       # y2[m, n+1]
    down = zq[:, Wh:N2 + Wh]                            # y2[m+1, n]
    dright = zq[:, Wh + 1:N2 + Wh + 1] * m2r            # y2[m+1, n+1]

    bd = bd_ref[...]                                    # (2, 1)
    inv_tau = 1.0 / tau_ref[0]

    def phase(a, b, c0, c1, feats):
        logits = jnp.dot(wd_ref[:, c0:c1], feats,
                         preferred_element_type=f32) + bd        # (2, N2)
        u = u_ref[0, a, b]                                        # (2, N2)
        g = -jnp.log(-jnp.log(u))
        z = (logits + g) * inv_tau
        d = z[1:2, :] - z[0:1, :]
        # 2-way gumbel softmax == sigmoid of the logit difference (closed form)
        p1 = 1.0 / (1.0 + jnp.exp(-d))
        p0 = 1.0 / (1.0 + jnp.exp(d))
        o_ref[0, a, b] = jnp.concatenate([p0, p1], axis=0)

    C = Co2
    phase(0, 0, 0 * C, 1 * C, center)
    phase(0, 1, 1 * C, 3 * C, jnp.concatenate([right, center], axis=0))
    phase(1, 0, 3 * C, 5 * C, jnp.concatenate([down, center], axis=0))
    phase(1, 1, 5 * C, 9 * C,
          jnp.concatenate([dright, down, right, center], axis=0))


# ---------------------------------------------------------------------------
# Wrapper: fold weights, build constants, one pallas_call, layout plumbing
# ---------------------------------------------------------------------------
def local_mask_predict_forward(x_nchw, params, tau, uniforms_nchw):
    """Pallas LocalMaskPredict.forward: x (B,C,H,W) -> spa_mask (B,2,H,W)."""
    w1, b1, w2, b2, wd, bd = params
    B, Ci, H, W = x_nchw.shape
    Hh, Wh = H // 2, W // 2
    N1, N2 = H * W, Hh * Wh
    Co1 = w1.shape[0]
    Co2 = w2.shape[0]
    f32 = jnp.float32

    # -- tap-folded conv weights: row order (kh, kw, ci) matches im2col --
    w1f = jnp.transpose(w1, (0, 2, 3, 1)).reshape(Co1, 9 * Ci)
    w2f = jnp.transpose(w2, (0, 2, 3, 1)).reshape(Co2, 9 * Co1)

    # -- per-phase folded ConvTranspose weights (wd: (Cin, 2, 3, 3)) --
    def wt(kh, kw):
        return wd[:, :, kh, kw].T                     # (2, Cin)
    wdf = jnp.concatenate(
        [wt(1, 1),                                    # even/even : center
         wt(1, 0), wt(1, 2),                          # even/odd  : right, center
         wt(0, 1), wt(2, 1),                          # odd/even  : down, center
         wt(0, 0), wt(0, 2), wt(2, 0), wt(2, 2)],     # odd/odd
        axis=1)                                       # (2, 9*Cin)

    # -- constant 2x2 avg-pool matrix and edge masks (computed once in XLA) --
    p_idx = jnp.arange(N1)
    q_idx = jnp.arange(N2)
    prow, pcol = p_idx // W, p_idx % W
    qrow, qcol = q_idx // Wh, q_idx % Wh
    pool = (((prow[:, None] // 2) == qrow[None, :])
            & ((pcol[:, None] // 2) == qcol[None, :])).astype(f32) * 0.25

    def edge_masks(n, w):
        col = jnp.arange(n) % w
        return jnp.stack([col != 0, col != (w - 1)]).astype(f32)   # (2, n)
    m1 = edge_masks(N1, W)
    m2 = edge_masks(N2, Wh)

    # -- gumbel uniforms into phase layout: u_ph[b, a, bb, c, m*Wh+n] = u[b, c, 2m+a, 2n+bb]
    u_ph = (uniforms_nchw.reshape(B, 2, Hh, 2, Wh, 2)
            .transpose(0, 3, 5, 1, 2, 4).reshape(B, 2, 2, 2, N2))

    x_flat = x_nchw.reshape(B, Ci, N1)
    tau_arr = jnp.full((1,), tau, f32)

    bcast2 = lambda i: (0, 0)
    out = pl.pallas_call(
        functools.partial(_fused_kernel, H=H, W=W),
        out_shape=jax.ShapeDtypeStruct((B, 2, 2, 2, N2), f32),
        grid=(B,),
        in_specs=[
            pl.BlockSpec((1, Ci, N1), lambda i: (i, 0, 0)),
            pl.BlockSpec((Co1, 9 * Ci), bcast2),
            pl.BlockSpec((Co1, 1), bcast2),
            pl.BlockSpec((N1, N2), bcast2),
            pl.BlockSpec((2, N1), bcast2),
            pl.BlockSpec((Co2, 9 * Co1), bcast2),
            pl.BlockSpec((Co2, 1), bcast2),
            pl.BlockSpec((2, N2), bcast2),
            pl.BlockSpec((2, 9 * Co2), bcast2),
            pl.BlockSpec((2, 1), bcast2),
            pl.BlockSpec((1, 2, 2, 2, N2), lambda i: (i, 0, 0, 0, 0)),
            pl.BlockSpec(memory_space=pltpu.SMEM),          # tau scalar
        ],
        out_specs=pl.BlockSpec((1, 2, 2, 2, N2), lambda i: (i, 0, 0, 0, 0)),
        scratch_shapes=[
            pltpu.VMEM((Ci, N1 + 2 * W + 2), f32),          # padded input tile
            pltpu.VMEM((Co1, N2 + 2 * Wh + 2), f32),        # padded pooled tile
            pltpu.VMEM((Co2, N2 + Wh + 2), f32),            # y2 padded (deconv shifts)
        ],
        compiler_params=pltpu.CompilerParams(
            dimension_semantics=("parallel",),
            vmem_limit_bytes=32 * 1024 * 1024),
    )(x_flat, w1f, b1.reshape(Co1, 1), pool, m1, w2f, b2.reshape(Co2, 1),
      m2, wdf, bd.reshape(2, 1), u_ph, tau_arr)

    # interleave the 4 output parities back to NCHW (pure XLA layout plumbing)
    out = (out.reshape(B, 2, 2, 2, Hh, Wh)
           .transpose(0, 3, 4, 1, 5, 2).reshape(B, 2, H, W))
    return out


# ---------------------------------------------------------------------------
# Pure-JAX reference (correctness check)
# ---------------------------------------------------------------------------
def reference_forward(x_nchw, params, tau, uniforms_nchw):
    w1, b1, w2, b2, wd, bd = params
    dn = ("NCHW", "OIHW", "NCHW")
    y = lax.conv_general_dilated(x_nchw, w1, (1, 1), ((1, 1), (1, 1)),
                                 dimension_numbers=dn) + b1[None, :, None, None]
    y = jnp.maximum(y, 0.0)
    B, C, H, W = y.shape
    y = y.reshape(B, C, H // 2, 2, W // 2, 2).mean(axis=(3, 5))
    y = lax.conv_general_dilated(y, w2, (1, 1), ((1, 1), (1, 1)),
                                 dimension_numbers=dn) + b2[None, :, None, None]
    y = jnp.maximum(y, 0.0)
    wd_conv = jnp.transpose(jnp.flip(wd, axis=(2, 3)), (1, 0, 2, 3))  # OIHW
    y = lax.conv_general_dilated(y, wd_conv, (1, 1), ((1, 2), (1, 2)),
                                 lhs_dilation=(2, 2),
                                 dimension_numbers=dn) + bd[None, :, None, None]
    g = -jnp.log(-jnp.log(uniforms_nchw))
    z = (y + g) / tau
    return jax.nn.softmax(z, axis=1)


# ---------------------------------------------------------------------------
if __name__ == "__main__":
    B, C_in, H, W = 2, 4, 16, 16
    nf = 32
    nf4 = nf // 4
    tau = 1.0

    key = jax.random.PRNGKey(0)
    k1, k2, k3, k4, k5, k6, kx, ku = jax.random.split(key, 8)

    # Deterministic parameter init (same shapes as the PyTorch module's layers).
    w1 = 0.2 * jax.random.normal(k1, (nf4, C_in, 3, 3), jnp.float32)   # Conv2d
    b1 = 0.05 * jax.random.normal(k2, (nf4,), jnp.float32)
    w2 = 0.2 * jax.random.normal(k3, (nf4, nf4, 3, 3), jnp.float32)    # Conv2d
    b2 = 0.05 * jax.random.normal(k4, (nf4,), jnp.float32)
    wd = 0.2 * jax.random.normal(k5, (nf4, 2, 3, 3), jnp.float32)      # ConvTranspose2d
    bd = 0.05 * jax.random.normal(k6, (2,), jnp.float32)
    params = (w1, b1, w2, b2, wd, bd)

    x = jax.random.normal(kx, (B, C_in, H, W), jnp.float32)

    # torch.rand_like + "resample until no exact zeros" -> strictly in (0, 1).
    uniforms = jax.random.uniform(ku, (B, 2, H, W), jnp.float32,
                                  minval=1e-6, maxval=1.0 - 1e-6)

    out = jax.block_until_ready(
        local_mask_predict_forward(x, params, tau, uniforms))

    ref = reference_forward(x, params, tau, uniforms)
    assert out.shape == (B, 2, H, W)
    assert jnp.allclose(out, ref, atol=1e-3, rtol=1e-3), (
        f"max abs err = {float(jnp.max(jnp.abs(out - ref)))}")

    print("KERNEL_OK")
</pallas_src>

<mosaic_0001>
module attributes {stable_mosaic.version = 11 : i64} {
  func.func @_fused_kernel(%arg0: i32, %arg1: memref<1x4x256xf32, #tpu.memory_space<vmem>>, %arg2: memref<8x36xf32, #tpu.memory_space<vmem>>, %arg3: memref<8x1xf32, #tpu.memory_space<vmem>>, %arg4: memref<256x64xf32, #tpu.memory_space<vmem>>, %arg5: memref<2x256xf32, #tpu.memory_space<vmem>>, %arg6: memref<8x72xf32, #tpu.memory_space<vmem>>, %arg7: memref<8x1xf32, #tpu.memory_space<vmem>>, %arg8: memref<2x64xf32, #tpu.memory_space<vmem>>, %arg9: memref<2x72xf32, #tpu.memory_space<vmem>>, %arg10: memref<2x1xf32, #tpu.memory_space<vmem>>, %arg11: memref<1x2x2x2x64xf32, #tpu.memory_space<vmem>>, %arg12: memref<1xf32, #tpu.memory_space<smem>>, %arg13: memref<1x2x2x2x64xf32, #tpu.memory_space<vmem>>, %arg14: memref<4x290xf32, #tpu.memory_space<vmem>>, %arg15: memref<8x82xf32, #tpu.memory_space<vmem>>, %arg16: memref<8x74xf32, #tpu.memory_space<vmem>>) attributes {dimension_semantics = [#tpu.dimension_semantics<parallel>], iteration_bounds = array<i64: 2>, scalar_prefetch = 0 : i64, scratch_operands = 3 : i64, tpu.core_type = #tpu.core_type<tc>, window_params = [{transform_indices = @transform_0, window_bounds = array<i64: 1, 4, 256>}, {pipeline_mode = #tpu.pipeline_mode<synchronous>, transform_indices = @transform_1, window_bounds = array<i64: 8, 36>}, {pipeline_mode = #tpu.pipeline_mode<synchronous>, transform_indices = @transform_2, window_bounds = array<i64: 8, 1>}, {pipeline_mode = #tpu.pipeline_mode<synchronous>, transform_indices = @transform_3, window_bounds = array<i64: 256, 64>}, {pipeline_mode = #tpu.pipeline_mode<synchronous>, transform_indices = @transform_4, window_bounds = array<i64: 2, 256>}, {pipeline_mode = #tpu.pipeline_mode<synchronous>, transform_indices = @transform_5, window_bounds = array<i64: 8, 72>}, {pipeline_mode = #tpu.pipeline_mode<synchronous>, transform_indices = @transform_6, window_bounds = array<i64: 8, 1>}, {pipeline_mode = #tpu.pipeline_mode<synchronous>, transform_indices = @transform_7, window_bounds = array<i64: 2, 64>}, {pipeline_mode = #tpu.pipeline_mode<synchronous>, transform_indices = @transform_8, window_bounds = array<i64: 2, 72>}, {pipeline_mode = #tpu.pipeline_mode<synchronous>, transform_indices = @transform_9, window_bounds = array<i64: 2, 1>}, {transform_indices = @transform_10, window_bounds = array<i64: 1, 2, 2, 2, 64>}, {transform_indices = @transform_11, window_bounds = array<i64: 1>}, {transform_indices = @transform_12, window_bounds = array<i64: 1, 2, 2, 2, 64>}]} {
    %c0 = arith.constant 0 : index
    %c0_0 = arith.constant 0 : index
    %0 = vector.load %arg5[%c0, %c0_0] : memref<2x256xf32, #tpu.memory_space<vmem>>, vector<1x256xf32>
    %c1 = arith.constant 1 : index
    %c0_1 = arith.constant 0 : index
    %1 = vector.load %arg5[%c1, %c0_1] : memref<2x256xf32, #tpu.memory_space<vmem>>, vector<1x256xf32>
    %c0_2 = arith.constant 0 : index
    %c0_3 = arith.constant 0 : index
    %2 = vector.load %arg8[%c0_2, %c0_3] : memref<2x64xf32, #tpu.memory_space<vmem>>, vector<1x64xf32>
    %c1_4 = arith.constant 1 : index
    %c0_5 = arith.constant 0 : index
    %3 = vector.load %arg8[%c1_4, %c0_5] : memref<2x64xf32, #tpu.memory_space<vmem>>, vector<1x64xf32>
    %cst = arith.constant 0.000000e+00 : f32
    %4 = vector.broadcast %cst : f32 to vector<4x290xf32>
    %c0_6 = arith.constant 0 : index
    %c0_7 = arith.constant 0 : index
    %5 = vector.load %arg14[%c0_6, %c0_7] : memref<4x290xf32, #tpu.memory_space<vmem>>, vector<4x290xf32>
    tpu.vector_store %arg14[%c0_6, %c0_7], %4 {strides = array<i32>} : memref<4x290xf32, #tpu.memory_space<vmem>>, vector<4x290xf32>,
    %c0_8 = arith.constant 0 : index
    %c0_9 = arith.constant 0 : index
    %c0_10 = arith.constant 0 : index
    %6 = vector.load %arg1[%c0_8, %c0_9, %c0_10] : memref<1x4x256xf32, #tpu.memory_space<vmem>>, vector<1x4x256xf32>
    %7 = vector.shape_cast %6 : vector<1x4x256xf32> to vector<4x256xf32>
    %c0_11 = arith.constant 0 : index
    %c17 = arith.constant 17 : index
    %8 = vector.load %arg14[%c0_11, %c17] : memref<4x290xf32, #tpu.memory_space<vmem>>, vector<4x256xf32>
    tpu.vector_store %arg14[%c0_11, %c17], %7 {strides = array<i32>} : memref<4x290xf32, #tpu.memory_space<vmem>>, vector<4x256xf32>,
    %c0_12 = arith.constant 0 : index
    %c0_13 = arith.constant 0 : index
    %9 = vector.load %arg14[%c0_12, %c0_13] : memref<4x290xf32, #tpu.memory_space<vmem>>, vector<4x256xf32>
    %10 = vector.broadcast %0 : vector<1x256xf32> to vector<4x256xf32>
    %11 = arith.mulf %9, %10 : vector<4x256xf32>
    %c0_14 = arith.constant 0 : index
    %c1_15 = arith.constant 1 : index
    %12 = vector.load %arg14[%c0_14, %c1_15] : memref<4x290xf32, #tpu.memory_space<vmem>>, vector<4x256xf32>
    %c0_16 = arith.constant 0 : index
    %c2 = arith.constant 2 : index
    %13 = vector.load %arg14[%c0_16, %c2] : memref<4x290xf32, #tpu.memory_space<vmem>>, vector<4x256xf32>
    %14 = vector.broadcast %1 : vector<1x256xf32> to vector<4x256xf32>
    %15 = arith.mulf %13, %14 : vector<4x256xf32>
    %c0_17 = arith.constant 0 : index
    %c16 = arith.constant 16 : index
    %16 = vector.load %arg14[%c0_17, %c16] : memref<4x290xf32, #tpu.memory_space<vmem>>, vector<4x256xf32>
    %17 = vector.broadcast %0 : vector<1x256xf32> to vector<4x256xf32>
    %18 = arith.mulf %16, %17 : vector<4x256xf32>
    %c0_18 = arith.constant 0 : index
    %c17_19 = arith.constant 17 : index
    %19 = vector.load %arg14[%c0_18, %c17_19] : memref<4x290xf32, #tpu.memory_space<vmem>>, vector<4x256xf32>
    %c0_20 = arith.constant 0 : index
    %c18 = arith.constant 18 : index
    %20 = vector.load %arg14[%c0_20, %c18] : memref<4x290xf32, #tpu.memory_space<vmem>>, vector<4x256xf32>
    %21 = vector.broadcast %1 : vector<1x256xf32> to vector<4x256xf32>
    %22 = arith.mulf %20, %21 : vector<4x256xf32>
    %c0_21 = arith.constant 0 : index
    %c32 = arith.constant 32 : index
    %23 = vector.load %arg14[%c0_21, %c32] : memref<4x290xf32, #tpu.memory_space<vmem>>, vector<4x256xf32>
    %24 = vector.broadcast %0 : vector<1x256xf32> to vector<4x256xf32>
    %25 = arith.mulf %23, %24 : vector<4x256xf32>
    %c0_22 = arith.constant 0 : index
    %c33 = arith.constant 33 : index
    %26 = vector.load %arg14[%c0_22, %c33] : memref<4x290xf32, #tpu.memory_space<vmem>>, vector<4x256xf32>
    %c0_23 = arith.constant 0 : index
    %c34 = arith.constant 34 : index
    %27 = vector.load %arg14[%c0_23, %c34] : memref<4x290xf32, #tpu.memory_space<vmem>>, vector<4x256xf32>
    %28 = vector.broadcast %1 : vector<1x256xf32> to vector<4x256xf32>
    %29 = arith.mulf %27, %28 : vector<4x256xf32>
    %30 = tpu.concatenate %11, %12, %15, %18, %19, %22, %25, %26, %29 in 0 : vector<4x256xf32>, vector<4x256xf32>, vector<4x256xf32>, vector<4x256xf32>, vector<4x256xf32>, vector<4x256xf32>, vector<4x256xf32>, vector<4x256xf32>, vector<4x256xf32> -> vector<36x256xf32>
    %c0_24 = arith.constant 0 : index
    %c0_25 = arith.constant 0 : index
    %31 = vector.load %arg2[%c0_24, %c0_25] : memref<8x36xf32, #tpu.memory_space<vmem>>, vector<8x36xf32>
    %cst_26 = arith.constant dense<0.000000e+00> : vector<8x256xf32>
    %32 = tpu.matmul %31, %30, %cst_26 {dimension_numbers = #tpu.dot_dimension_numbers<[1], [0], [0], [1], [0, 0, 1, 1], [], []>} : vector<8x36xf32>, vector<36x256xf32>, vector<8x256xf32> -> vector<8x256xf32>
    %c0_27 = arith.constant 0 : index
    %c0_28 = arith.constant 0 : index
    %33 = vector.load %arg3[%c0_27, %c0_28] : memref<8x1xf32, #tpu.memory_space<vmem>>, vector<8x1xf32>
    %34 = vector.broadcast %33 : vector<8x1xf32> to vector<8x256xf32>
    %35 = arith.addf %32, %34 : vector<8x256xf32>
    %cst_29 = arith.constant 0.000000e+00 : f32
    %36 = vector.broadcast %cst_29 : f32 to vector<8x256xf32>
    %37 = arith.maximumf %35, %36 : vector<8x256xf32>
    %c0_30 = arith.constant 0 : index
    %c0_31 = arith.constant 0 : index
    %38 = vector.load %arg4[%c0_30, %c0_31] : memref<256x64xf32, #tpu.memory_space<vmem>>, vector<256x64xf32>
    %cst_32 = arith.constant dense<0.000000e+00> : vector<8x64xf32>
    %39 = tpu.matmul %37, %38, %cst_32 {dimension_numbers = #tpu.dot_dimension_numbers<[1], [0], [0], [1], [0, 0, 1, 1], [], []>} : vector<8x256xf32>, vector<256x64xf32>, vector<8x64xf32> -> vector<8x64xf32>
    %cst_33 = arith.constant 0.000000e+00 : f32
    %40 = vector.broadcast %cst_33 : f32 to vector<8x82xf32>
    %c0_34 = arith.constant 0 : index
    %c0_35 = arith.constant 0 : index
    %41 = vector.load %arg15[%c0_34, %c0_35] : memref<8x82xf32, #tpu.memory_space<vmem>>, vector<8x82xf32>
    tpu.vector_store %arg15[%c0_34, %c0_35], %40 {strides = array<i32>} : memref<8x82xf32, #tpu.memory_space<vmem>>, vector<8x82xf32>,
    %c0_36 = arith.constant 0 : index
    %c9 = arith.constant 9 : index
    %42 = vector.load %arg15[%c0_36, %c9] : memref<8x82xf32, #tpu.memory_space<vmem>>, vector<8x64xf32>
    tpu.vector_store %arg15[%c0_36, %c9], %39 {strides = array<i32>} : memref<8x82xf32, #tpu.memory_space<vmem>>, vector<8x64xf32>,
    %c0_37 = arith.constant 0 : index
    %c0_38 = arith.constant 0 : index
    %43 = vector.load %arg15[%c0_37, %c0_38] : memref<8x82xf32, #tpu.memory_space<vmem>>, vector<8x64xf32>
    %44 = vector.broadcast %2 : vector<1x64xf32> to vector<8x64xf32>
    %45 = arith.mulf %43, %44 : vector<8x64xf32>
    %c0_39 = arith.constant 0 : index
    %c1_40 = arith.constant 1 : index
    %46 = vector.load %arg15[%c0_39, %c1_40] : memref<8x82xf32, #tpu.memory_space<vmem>>, vector<8x64xf32>
    %c0_41 = arith.constant 0 : index
    %c2_42 = arith.constant 2 : index
    %47 = vector.load %arg15[%c0_41, %c2_42] : memref<8x82xf32, #tpu.memory_space<vmem>>, vector<8x64xf32>
    %48 = vector.broadcast %3 : vector<1x64xf32> to vector<8x64xf32>
    %49 = arith.mulf %47, %48 : vector<8x64xf32>
    %c0_43 = arith.constant 0 : index
    %c8 = arith.constant 8 : index
    %50 = vector.load %arg15[%c0_43, %c8] : memref<8x82xf32, #tpu.memory_space<vmem>>, vector<8x64xf32>
    %51 = vector.broadcast %2 : vector<1x64xf32> to vector<8x64xf32>
    %52 = arith.mulf %50, %51 : vector<8x64xf32>
    %c0_44 = arith.constant 0 : index
    %c9_45 = arith.constant 9 : index
    %53 = vector.load %arg15[%c0_44, %c9_45] : memref<8x82xf32, #tpu.memory_space<vmem>>, vector<8x64xf32>
    %c0_46 = arith.constant 0 : index
    %c10 = arith.constant 10 : index
    %54 = vector.load %arg15[%c0_46, %c10] : memref<8x82xf32, #tpu.memory_space<vmem>>, vector<8x64xf32>
    %55 = vector.broadcast %3 : vector<1x64xf32> to vector<8x64xf32>
    %56 = arith.mulf %54, %55 : vector<8x64xf32>
    %c0_47 = arith.constant 0 : index
    %c16_48 = arith.constant 16 : index
    %57 = vector.load %arg15[%c0_47, %c16_48] : memref<8x82xf32, #tpu.memory_space<vmem>>, vector<8x64xf32>
    %58 = vector.broadcast %2 : vector<1x64xf32> to vector<8x64xf32>
    %59 = arith.mulf %57, %58 : vector<8x64xf32>
    %c0_49 = arith.constant 0 : index
    %c17_50 = arith.constant 17 : index
    %60 = vector.load %arg15[%c0_49, %c17_50] : memref<8x82xf32, #tpu.memory_space<vmem>>, vector<8x64xf32>
    %c0_51 = arith.constant 0 : index
    %c18_52 = arith.constant 18 : index
    %61 = vector.load %arg15[%c0_51, %c18_52] : memref<8x82xf32, #tpu.memory_space<vmem>>, vector<8x64xf32>
    %62 = vector.broadcast %3 : vector<1x64xf32> to vector<8x64xf32>
    %63 = arith.mulf %61, %62 : vector<8x64xf32>
    %64 = tpu.concatenate %45, %46, %49, %52, %53, %56, %59, %60, %63 in 0 : vector<8x64xf32>, vector<8x64xf32>, vector<8x64xf32>, vector<8x64xf32>, vector<8x64xf32>, vector<8x64xf32>, vector<8x64xf32>, vector<8x64xf32>, vector<8x64xf32> -> vector<72x64xf32>
    %c0_53 = arith.constant 0 : index
    %c0_54 = arith.constant 0 : index
    %65 = vector.load %arg6[%c0_53, %c0_54] : memref<8x72xf32, #tpu.memory_space<vmem>>, vector<8x72xf32>
    %cst_55 = arith.constant dense<0.000000e+00> : vector<8x64xf32>
    %66 = tpu.matmul %65, %64, %cst_55 {dimension_numbers = #tpu.dot_dimension_numbers<[1], [0], [0], [1], [0, 0, 1, 1], [], []>} : vector<8x72xf32>, vector<72x64xf32>, vector<8x64xf32> -> vector<8x64xf32>
    %c0_56 = arith.constant 0 : index
    %c0_57 = arith.constant 0 : index
    %67 = vector.load %arg7[%c0_56, %c0_57] : memref<8x1xf32, #tpu.memory_space<vmem>>, vector<8x1xf32>
    %68 = vector.broadcast %67 : vector<8x1xf32> to vector<8x64xf32>
    %69 = arith.addf %66, %68 : vector<8x64xf32>
    %cst_58 = arith.constant 0.000000e+00 : f32
    %70 = vector.broadcast %cst_58 : f32 to vector<8x64xf32>
    %71 = arith.maximumf %69, %70 : vector<8x64xf32>
    %cst_59 = arith.constant 0.000000e+00 : f32
    %72 = vector.broadcast %cst_59 : f32 to vector<8x74xf32>
    %c0_60 = arith.constant 0 : index
    %c0_61 = arith.constant 0 : index
    %73 = vector.load %arg16[%c0_60, %c0_61] : memref<8x74xf32, #tpu.memory_space<vmem>>, vector<8x74xf32>
    tpu.vector_store %arg16[%c0_60, %c0_61], %72 {strides = array<i32>} : memref<8x74xf32, #tpu.memory_space<vmem>>, vector<8x74xf32>,
    %c0_62 = arith.constant 0 : index
    %c0_63 = arith.constant 0 : index
    %74 = vector.load %arg16[%c0_62, %c0_63] : memref<8x74xf32, #tpu.memory_space<vmem>>, vector<8x64xf32>
    tpu.vector_store %arg16[%c0_62, %c0_63], %71 {strides = array<i32>} : memref<8x74xf32, #tpu.memory_space<vmem>>, vector<8x64xf32>,
    %c0_64 = arith.constant 0 : index
    %c1_65 = arith.constant 1 : index
    %75 = vector.load %arg16[%c0_64, %c1_65] : memref<8x74xf32, #tpu.memory_space<vmem>>, vector<8x64xf32>
    %76 = vector.broadcast %3 : vector<1x64xf32> to vector<8x64xf32>
    %77 = arith.mulf %75, %76 : vector<8x64xf32>
    %c0_66 = arith.constant 0 : index
    %c8_67 = arith.constant 8 : index
    %78 = vector.load %arg16[%c0_66, %c8_67] : memref<8x74xf32, #tpu.memory_space<vmem>>, vector<8x64xf32>
    %c0_68 = arith.constant 0 : index
    %c9_69 = arith.constant 9 : index
    %79 = vector.load %arg16[%c0_68, %c9_69] : memref<8x74xf32, #tpu.memory_space<vmem>>, vector<8x64xf32>
    %80 = vector.broadcast %3 : vector<1x64xf32> to vector<8x64xf32>
    %81 = arith.mulf %79, %80 : vector<8x64xf32>
    %c0_70 = arith.constant 0 : index
    %c0_71 = arith.constant 0 : index
    %82 = vector.load %arg10[%c0_70, %c0_71] : memref<2x1xf32, #tpu.memory_space<vmem>>, vector<2x1xf32>
    %c0_72 = arith.constant 0 : index
    %83 = memref.load %arg12[%c0_72] : memref<1xf32, #tpu.memory_space<smem>>
    %cst_73 = arith.constant 1.000000e+00 : f32
    %84 = arith.divf %cst_73, %83 : f32
    %c0_74 = arith.constant 0 : index
    %c0_75 = arith.constant 0 : index
    %85 = vector.load %arg9[%c0_74, %c0_75] : memref<2x72xf32, #tpu.memory_space<vmem>>, vector<2x8xf32>
    %cst_76 = arith.constant dense<0.000000e+00> : vector<2x64xf32>
    %86 = tpu.matmul %85, %71, %cst_76 {dimension_numbers = #tpu.dot_dimension_numbers<[1], [0], [0], [1], [0, 0, 1, 1], [], []>} : vector<2x8xf32>, vector<8x64xf32>, vector<2x64xf32> -> vector<2x64xf32>
    %87 = vector.broadcast %82 : vector<2x1xf32> to vector<2x64xf32>
    %88 = arith.addf %86, %87 : vector<2x64xf32>
    %c0_77 = arith.constant 0 : index
    %c0_78 = arith.constant 0 : index
    %c0_79 = arith.constant 0 : index
    %c0_80 = arith.constant 0 : index
    %c0_81 = arith.constant 0 : index
    %89 = vector.load %arg11[%c0_77, %c0_78, %c0_79, %c0_80, %c0_81] : memref<1x2x2x2x64xf32, #tpu.memory_space<vmem>>, vector<1x1x1x2x64xf32>
    %90 = vector.shape_cast %89 : vector<1x1x1x2x64xf32> to vector<2x64xf32>
    %91 = math.log %90 : vector<2x64xf32>
    %cst_82 = arith.constant 0.000000e+00 : f32
    %92 = vector.broadcast %cst_82 : f32 to vector<2x64xf32>
    %93 = arith.subf %92, %91 : vector<2x64xf32>
    %94 = math.log %93 : vector<2x64xf32>
    %cst_83 = arith.constant 0.000000e+00 : f32
    %95 = vector.broadcast %cst_83 : f32 to vector<2x64xf32>
    %96 = arith.subf %95, %94 : vector<2x64xf32>
    %97 = arith.addf %88, %96 : vector<2x64xf32>
    %98 = vector.broadcast %84 : f32 to vector<2x64xf32>
    %99 = arith.mulf %97, %98 : vector<2x64xf32>
    %100 = vector.extract_strided_slice %99 {offsets = [1, 0], sizes = [1, 64], strides = [1, 1]} : vector<2x64xf32> to vector<1x64xf32>
    %101 = vector.extract_strided_slice %99 {offsets = [0, 0], sizes = [1, 64], strides = [1, 1]} : vector<2x64xf32> to vector<1x64xf32>
    %102 = arith.subf %100, %101 : vector<1x64xf32>
    %cst_84 = arith.constant 0.000000e+00 : f32
    %103 = vector.broadcast %cst_84 : f32 to vector<1x64xf32>
    %104 = arith.subf %103, %102 : vector<1x64xf32>
    %105 = math.exp %104 : vector<1x64xf32>
    %cst_85 = arith.constant 1.000000e+00 : f32
    %106 = vector.broadcast %cst_85 : f32 to vector<1x64xf32>
    %107 = arith.addf %106, %105 : vector<1x64xf32>
    %cst_86 = arith.constant 1.000000e+00 : f32
    %108 = vector.broadcast %cst_86 : f32 to vector<1x64xf32>
    %109 = arith.divf %108, %107 : vector<1x64xf32>
    %110 = math.exp %102 : vector<1x64xf32>
    %cst_87 = arith.constant 1.000000e+00 : f32
    %111 = vector.broadcast %cst_87 : f32 to vector<1x64xf32>
    %112 = arith.addf %111, %110 : vector<1x64xf32>
    %cst_88 = arith.constant 1.000000e+00 : f32
    %113 = vector.broadcast %cst_88 : f32 to vector<1x64xf32>
    %114 = arith.divf %113, %112 : vector<1x64xf32>
    %115 = tpu.concatenate %114, %109 in 0 : vector<1x64xf32>, vector<1x64xf32> -> vector<2x64xf32>
    %c0_89 = arith.constant 0 : index
    %c0_90 = arith.constant 0 : index
    %c0_91 = arith.constant 0 : index
    %c0_92 = arith.constant 0 : index
    %c0_93 = arith.constant 0 : index
    %116 = vector.load %arg13[%c0_89, %c0_90, %c0_91, %c0_92, %c0_93] : memref<1x2x2x2x64xf32, #tpu.memory_space<vmem>>, vector<1x1x1x2x64xf32>
    %117 = vector.shape_cast %116 : vector<1x1x1x2x64xf32> to vector<2x64xf32>
    %118 = vector.shape_cast %115 : vector<2x64xf32> to vector<1x1x1x2x64xf32>
    tpu.vector_store %arg13[%c0_89, %c0_90, %c0_91, %c0_92, %c0_93], %118 {strides = array<i32>} : memref<1x2x2x2x64xf32, #tpu.memory_space<vmem>>, vector<1x1x1x2x64xf32>,
    %119 = tpu.concatenate %77, %71 in 0 : vector<8x64xf32>, vector<8x64xf32> -> vector<16x64xf32>
    %c0_94 = arith.constant 0 : index
    %c8_95 = arith.constant 8 : index
    %120 = vector.load %arg9[%c0_94, %c8_95] : memref<2x72xf32, #tpu.memory_space<vmem>>, vector<2x16xf32>
    %cst_96 = arith.constant dense<0.000000e+00> : vector<2x64xf32>
    %121 = tpu.matmul %120, %119, %cst_96 {dimension_numbers = #tpu.dot_dimension_numbers<[1], [0], [0], [1], [0, 0, 1, 1], [], []>} : vector<2x16xf32>, vector<16x64xf32>, vector<2x64xf32> -> vector<2x64xf32>
    %122 = vector.broadcast %82 : vector<2x1xf32> to vector<2x64xf32>
    %123 = arith.addf %121, %122 : vector<2x64xf32>
    %c0_97 = arith.constant 0 : index
    %c0_98 = arith.constant 0 : index
    %c1_99 = arith.constant 1 : index
    %c0_100 = arith.constant 0 : index
    %c0_101 = arith.constant 0 : index
    %124 = vector.load %arg11[%c0_97, %c0_98, %c1_99, %c0_100, %c0_101] : memref<1x2x2x2x64xf32, #tpu.memory_space<vmem>>, vector<1x1x1x2x64xf32>
    %125 = vector.shape_cast %124 : vector<1x1x1x2x64xf32> to vector<2x64xf32>
    %126 = math.log %125 : vector<2x64xf32>
    %cst_102 = arith.constant 0.000000e+00 : f32
    %127 = vector.broadcast %cst_102 : f32 to vector<2x64xf32>
    %128 = arith.subf %127, %126 : vector<2x64xf32>
    %129 = math.log %128 : vector<2x64xf32>
    %cst_103 = arith.constant 0.000000e+00 : f32
    %130 = vector.broadcast %cst_103 : f32 to vector<2x64xf32>
    %131 = arith.subf %130, %129 : vector<2x64xf32>
    %132 = arith.addf %123, %131 : vector<2x64xf32>
    %133 = vector.broadcast %84 : f32 to vector<2x64xf32>
    %134 = arith.mulf %132, %133 : vector<2x64xf32>
    %135 = vector.extract_strided_slice %134 {offsets = [1, 0], sizes = [1, 64], strides = [1, 1]} : vector<2x64xf32> to vector<1x64xf32>
    %136 = vector.extract_strided_slice %134 {offsets = [0, 0], sizes = [1, 64], strides = [1, 1]} : vector<2x64xf32> to vector<1x64xf32>
    %137 = arith.subf %135, %136 : vector<1x64xf32>
    %cst_104 = arith.constant 0.000000e+00 : f32
    %138 = vector.broadcast %cst_104 : f32 to vector<1x64xf32>
    %139 = arith.subf %138, %137 : vector<1x64xf32>
    %140 = math.exp %139 : vector<1x64xf32>
    %cst_105 = arith.constant 1.000000e+00 : f32
    %141 = vector.broadcast %cst_105 : f32 to vector<1x64xf32>
    %142 = arith.addf %141, %140 : vector<1x64xf32>
    %cst_106 = arith.constant 1.000000e+00 : f32
    %143 = vector.broadcast %cst_106 : f32 to vector<1x64xf32>
    %144 = arith.divf %143, %142 : vector<1x64xf32>
    %145 = math.exp %137 : vector<1x64xf32>
    %cst_107 = arith.constant 1.000000e+00 : f32
    %146 = vector.broadcast %cst_107 : f32 to vector<1x64xf32>
    %147 = arith.addf %146, %145 : vector<1x64xf32>
    %cst_108 = arith.constant 1.000000e+00 : f32
    %148 = vector.broadcast %cst_108 : f32 to vector<1x64xf32>
    %149 = arith.divf %148, %147 : vector<1x64xf32>
    %150 = tpu.concatenate %149, %144 in 0 : vector<1x64xf32>, vector<1x64xf32> -> vector<2x64xf32>
    %c0_109 = arith.constant 0 : index
    %c0_110 = arith.constant 0 : index
    %c1_111 = arith.constant 1 : index
    %c0_112 = arith.constant 0 : index
    %c0_113 = arith.constant 0 : index
    %151 = vector.load %arg13[%c0_109, %c0_110, %c1_111, %c0_112, %c0_113] : memref<1x2x2x2x64xf32, #tpu.memory_space<vmem>>, vector<1x1x1x2x64xf32>
    %152 = vector.shape_cast %151 : vector<1x1x1x2x64xf32> to vector<2x64xf32>
    %153 = vector.shape_cast %150 : vector<2x64xf32> to vector<1x1x1x2x64xf32>
    tpu.vector_store %arg13[%c0_109, %c0_110, %c1_111, %c0_112, %c0_113], %153 {strides = array<i32>} : memref<1x2x2x2x64xf32, #tpu.memory_space<vmem>>, vector<1x1x1x2x64xf32>,
    %154 = tpu.concatenate %78, %71 in 0 : vector<8x64xf32>, vector<8x64xf32> -> vector<16x64xf32>
    %c0_114 = arith.constant 0 : index
    %c24 = arith.constant 24 : index
    %155 = vector.load %arg9[%c0_114, %c24] : memref<2x72xf32, #tpu.memory_space<vmem>>, vector<2x16xf32>
    %cst_115 = arith.constant dense<0.000000e+00> : vector<2x64xf32>
    %156 = tpu.matmul %155, %154, %cst_115 {dimension_numbers = #tpu.dot_dimension_numbers<[1], [0], [0], [1], [0, 0, 1, 1], [], []>} : vector<2x16xf32>, vector<16x64xf32>, vector<2x64xf32> -> vector<2x64xf32>
    %157 = vector.broadcast %82 : vector<2x1xf32> to vector<2x64xf32>
    %158 = arith.addf %156, %157 : vector<2x64xf32>
    %c0_116 = arith.constant 0 : index
    %c1_117 = arith.constant 1 : index
    %c0_118 = arith.constant 0 : index
    %c0_119 = arith.constant 0 : index
    %c0_120 = arith.constant 0 : index
    %159 = vector.load %arg11[%c0_116, %c1_117, %c0_118, %c0_119, %c0_120] : memref<1x2x2x2x64xf32, #tpu.memory_space<vmem>>, vector<1x1x1x2x64xf32>
    %160 = vector.shape_cast %159 : vector<1x1x1x2x64xf32> to vector<2x64xf32>
    %161 = math.log %160 : vector<2x64xf32>
    %cst_121 = arith.constant 0.000000e+00 : f32
    %162 = vector.broadcast %cst_121 : f32 to vector<2x64xf32>
    %163 = arith.subf %162, %161 : vector<2x64xf32>
    %164 = math.log %163 : vector<2x64xf32>
    %cst_122 = arith.constant 0.000000e+00 : f32
    %165 = vector.broadcast %cst_122 : f32 to vector<2x64xf32>
    %166 = arith.subf %165, %164 : vector<2x64xf32>
    %167 = arith.addf %158, %166 : vector<2x64xf32>
    %168 = vector.broadcast %84 : f32 to vector<2x64xf32>
    %169 = arith.mulf %167, %168 : vector<2x64xf32>
    %170 = vector.extract_strided_slice %169 {offsets = [1, 0], sizes = [1, 64], strides = [1, 1]} : vector<2x64xf32> to vector<1x64xf32>
    %171 = vector.extract_strided_slice %169 {offsets = [0, 0], sizes = [1, 64], strides = [1, 1]} : vector<2x64xf32> to vector<1x64xf32>
    %172 = arith.subf %170, %171 : vector<1x64xf32>
    %cst_123 = arith.constant 0.000000e+00 : f32
    %173 = vector.broadcast %cst_123 : f32 to vector<1x64xf32>
    %174 = arith.subf %173, %172 : vector<1x64xf32>
    %175 = math.exp %174 : vector<1x64xf32>
    %cst_124 = arith.constant 1.000000e+00 : f32
    %176 = vector.broadcast %cst_124 : f32 to vector<1x64xf32>
    %177 = arith.addf %176, %175 : vector<1x64xf32>
    %cst_125 = arith.constant 1.000000e+00 : f32
    %178 = vector.broadcast %cst_125 : f32 to vector<1x64xf32>
    %179 = arith.divf %178, %177 : vector<1x64xf32>
    %180 = math.exp %172 : vector<1x64xf32>
    %cst_126 = arith.constant 1.000000e+00 : f32
    %181 = vector.broadcast %cst_126 : f32 to vector<1x64xf32>
    %182 = arith.addf %181, %180 : vector<1x64xf32>
    %cst_127 = arith.constant 1.000000e+00 : f32
    %183 = vector.broadcast %cst_127 : f32 to vector<1x64xf32>
    %184 = arith.divf %183, %182 : vector<1x64xf32>
    %185 = tpu.concatenate %184, %179 in 0 : vector<1x64xf32>, vector<1x64xf32> -> vector<2x64xf32>
    %c0_128 = arith.constant 0 : index
    %c1_129 = arith.constant 1 : index
    %c0_130 = arith.constant 0 : index
    %c0_131 = arith.constant 0 : index
    %c0_132 = arith.constant 0 : index
    %186 = vector.load %arg13[%c0_128, %c1_129, %c0_130, %c0_131, %c0_132] : memref<1x2x2x2x64xf32, #tpu.memory_space<vmem>>, vector<1x1x1x2x64xf32>
    %187 = vector.shape_cast %186 : vector<1x1x1x2x64xf32> to vector<2x64xf32>
    %188 = vector.shape_cast %185 : vector<2x64xf32> to vector<1x1x1x2x64xf32>
    tpu.vector_store %arg13[%c0_128, %c1_129, %c0_130, %c0_131, %c0_132], %188 {strides = array<i32>} : memref<1x2x2x2x64xf32, #tpu.memory_space<vmem>>, vector<1x1x1x2x64xf32>,
    %189 = tpu.concatenate %81, %78, %77, %71 in 0 : vector<8x64xf32>, vector<8x64xf32>, vector<8x64xf32>, vector<8x64xf32> -> vector<32x64xf32>
    %c0_133 = arith.constant 0 : index
    %c40 = arith.constant 40 : index
    %190 = vector.load %arg9[%c0_133, %c40] : memref<2x72xf32, #tpu.memory_space<vmem>>, vector<2x32xf32>
    %cst_134 = arith.constant dense<0.000000e+00> : vector<2x64xf32>
    %191 = tpu.matmul %190, %189, %cst_134 {dimension_numbers = #tpu.dot_dimension_numbers<[1], [0], [0], [1], [0, 0, 1, 1], [], []>} : vector<2x32xf32>, vector<32x64xf32>, vector<2x64xf32> -> vector<2x64xf32>
    %192 = vector.broadcast %82 : vector<2x1xf32> to vector<2x64xf32>
    %193 = arith.addf %191, %192 : vector<2x64xf32>
    %c0_135 = arith.constant 0 : index
    %c1_136 = arith.constant 1 : index
    %c1_137 = arith.constant 1 : index
    %c0_138 = arith.constant 0 : index
    %c0_139 = arith.constant 0 : index
    %194 = vector.load %arg11[%c0_135, %c1_136, %c1_137, %c0_138, %c0_139] : memref<1x2x2x2x64xf32, #tpu.memory_space<vmem>>, vector<1x1x1x2x64xf32>
    %195 = vector.shape_cast %194 : vector<1x1x1x2x64xf32> to vector<2x64xf32>
    %196 = math.log %195 : vector<2x64xf32>
    %cst_140 = arith.constant 0.000000e+00 : f32
    %197 = vector.broadcast %cst_140 : f32 to vector<2x64xf32>
    %198 = arith.subf %197, %196 : vector<2x64xf32>
    %199 = math.log %198 : vector<2x64xf32>
    %cst_141 = arith.constant 0.000000e+00 : f32
    %200 = vector.broadcast %cst_141 : f32 to vector<2x64xf32>
    %201 = arith.subf %200, %199 : vector<2x64xf32>
    %202 = arith.addf %193, %201 : vector<2x64xf32>
    %203 = vector.broadcast %84 : f32 to vector<2x64xf32>
    %204 = arith.mulf %202, %203 : vector<2x64xf32>
    %205 = vector.extract_strided_slice %204 {offsets = [1, 0], sizes = [1, 64], strides = [1, 1]} : vector<2x64xf32> to vector<1x64xf32>
    %206 = vector.extract_strided_slice %204 {offsets = [0, 0], sizes = [1, 64], strides = [1, 1]} : vector<2x64xf32> to vector<1x64xf32>
    %207 = arith.subf %205, %206 : vector<1x64xf32>
    %cst_142 = arith.constant 0.000000e+00 : f32
    %208 = vector.broadcast %cst_142 : f32 to vector<1x64xf32>
    %209 = arith.subf %208, %207 : vector<1x64xf32>
    %210 = math.exp %209 : vector<1x64xf32>
    %cst_143 = arith.constant 1.000000e+00 : f32
    %211 = vector.broadcast %cst_143 : f32 to vector<1x64xf32>
    %212 = arith.addf %211, %210 : vector<1x64xf32>
    %cst_144 = arith.constant 1.000000e+00 : f32
    %213 = vector.broadcast %cst_144 : f32 to vector<1x64xf32>
    %214 = arith.divf %213, %212 : vector<1x64xf32>
    %215 = math.exp %207 : vector<1x64xf32>
    %cst_145 = arith.constant 1.000000e+00 : f32
    %216 = vector.broadcast %cst_145 : f32 to vector<1x64xf32>
    %217 = arith.addf %216, %215 : vector<1x64xf32>
    %cst_146 = arith.constant 1.000000e+00 : f32
    %218 = vector.broadcast %cst_146 : f32 to vector<1x64xf32>
    %219 = arith.divf %218, %217 : vector<1x64xf32>
    %220 = tpu.concatenate %219, %214 in 0 : vector<1x64xf32>, vector<1x64xf32> -> vector<2x64xf32>
    %c0_147 = arith.constant 0 : index
    %c1_148 = arith.constant 1 : index
    %c1_149 = arith.constant 1 : index
    %c0_150 = arith.constant 0 : index
    %c0_151 = arith.constant 0 : index
    %221 = vector.load %arg13[%c0_147, %c1_148, %c1_149, %c0_150, %c0_151] : memref<1x2x2x2x64xf32, #tpu.memory_space<vmem>>, vector<1x1x1x2x64xf32>
    %222 = vector.shape_cast %221 : vector<1x1x1x2x64xf32> to vector<2x64xf32>
    %223 = vector.shape_cast %220 : vector<2x64xf32> to vector<1x1x1x2x64xf32>
    tpu.vector_store %arg13[%c0_147, %c1_148, %c1_149, %c0_150, %c0_151], %223 {strides = array<i32>} : memref<1x2x2x2x64xf32, #tpu.memory_space<vmem>>, vector<1x1x1x2x64xf32>,
    return
  }
  func.func @transform_0(%arg0: i32) -> (i32, i32, i32) {
    %c0_i32 = arith.constant 0 : i32
    %c0_i32_0 = arith.constant 0 : i32
    %c0_i32_1 = arith.constant 0 : i32
    return %arg0, %c0_i32, %c0_i32_0 : i32, i32, i32
  }
  func.func @transform_1(%arg0: i32) -> (i32, i32) {
    %c0_i32 = arith.constant 0 : i32
    %c0_i32_0 = arith.constant 0 : i32
    %c0_i32_1 = arith.constant 0 : i32
    return %c0_i32, %c0_i32_0 : i32, i32
  }
  func.func @transform_2(%arg0: i32) -> (i32, i32) {
    %c0_i32 = arith.constant 0 : i32
    %c0_i32_0 = arith.constant 0 : i32
    %c0_i32_1 = arith.constant 0 : i32
    return %c0_i32, %c0_i32_0 : i32, i32
  }
  func.func @transform_3(%arg0: i32) -> (i32, i32) {
    %c0_i32 = arith.constant 0 : i32
    %c0_i32_0 = arith.constant 0 : i32
    %c0_i32_1 = arith.constant 0 : i32
    return %c0_i32, %c0_i32_0 : i32, i32
  }
  func.func @transform_4(%arg0: i32) -> (i32, i32) {
    %c0_i32 = arith.constant 0 : i32
    %c0_i32_0 = arith.constant 0 : i32
    %c0_i32_1 = arith.constant 0 : i32
    return %c0_i32, %c0_i32_0 : i32, i32
  }
  func.func @transform_5(%arg0: i32) -> (i32, i32) {
    %c0_i32 = arith.constant 0 : i32
    %c0_i32_0 = arith.constant 0 : i32
    %c0_i32_1 = arith.constant 0 : i32
    return %c0_i32, %c0_i32_0 : i32, i32
  }
  func.func @transform_6(%arg0: i32) -> (i32, i32) {
    %c0_i32 = arith.constant 0 : i32
    %c0_i32_0 = arith.constant 0 : i32
    %c0_i32_1 = arith.constant 0 : i32
    return %c0_i32, %c0_i32_0 : i32, i32
  }
  func.func @transform_7(%arg0: i32) -> (i32, i32) {
    %c0_i32 = arith.constant 0 : i32
    %c0_i32_0 = arith.constant 0 : i32
    %c0_i32_1 = arith.constant 0 : i32
    return %c0_i32, %c0_i32_0 : i32, i32
  }
  func.func @transform_8(%arg0: i32) -> (i32, i32) {
    %c0_i32 = arith.constant 0 : i32
    %c0_i32_0 = arith.constant 0 : i32
    %c0_i32_1 = arith.constant 0 : i32
    return %c0_i32, %c0_i32_0 : i32, i32
  }
  func.func @transform_9(%arg0: i32) -> (i32, i32) {
    %c0_i32 = arith.constant 0 : i32
    %c0_i32_0 = arith.constant 0 : i32
    %c0_i32_1 = arith.constant 0 : i32
    return %c0_i32, %c0_i32_0 : i32, i32
  }
  func.func @transform_10(%arg0: i32) -> (i32, i32, i32, i32, i32) {
    %c0_i32 = arith.constant 0 : i32
    %c0_i32_0 = arith.constant 0 : i32
    %c0_i32_1 = arith.constant 0 : i32
    %c0_i32_2 = arith.constant 0 : i32
    %c0_i32_3 = arith.constant 0 : i32
    return %arg0, %c0_i32, %c0_i32_0, %c0_i32_1, %c0_i32_2 : i32, i32, i32, i32, i32
  }
  func.func @transform_11(%arg0: i32) -> i32 {
    %c0_i32 = arith.constant 0 : i32
    %c0_i32_0 = arith.constant 0 : i32
    return %c0_i32 : i32
  }
  func.func @transform_12(%arg0: i32) -> (i32, i32, i32, i32, i32) {
    %c0_i32 = arith.constant 0 : i32
    %c0_i32_0 = arith.constant 0 : i32
    %c0_i32_1 = arith.constant 0 : i32
    %c0_i32_2 = arith.constant 0 : i32
    %c0_i32_3 = arith.constant 0 : i32
    return %arg0, %c0_i32, %c0_i32_0, %c0_i32_1, %c0_i32_2 : i32, i32, i32, i32, i32
  }
}

</mosaic_0001>

<llo_original>
// kernel: tpu_custom_call.1
$region0: #{tpu_custom_call.1}
  #allocation0 [shape = 'u32[]', space=smem, size = 0x4, offset = 0x4, fixed_abs, tag = 'smem constant byte address 0x4 - core index']
  #allocation1 [shape = 'u32[144,128]{1,0:T(1,128)}', space=vmem, size = 0x12000, scoped, tag = 'internal scratch']
  #allocation2 [shape = 'f32[4,290]{1,0:T(4,128)}', space=vmem, size = 0x1800, scoped, tag = 'scratch operand']
  #allocation3 [shape = 'f32[8,82]{1,0:T(8,128)}', space=vmem, size = 0x1000, scoped, tag = 'scratch operand']
  #allocation4 [shape = 'f32[8,74]{1,0:T(8,128)}', space=vmem, size = 0x1000, scoped, tag = 'scratch operand']
  #allocation5 [shape = 'f32[1]{0:T(128)S(6)}', space=smem, size = 0x200, scoped, tag = 'scoped memory for tpu_custom_call.1']
  %s0 = inlined_call_operand.vmem [shape: f32[2,4,256], index: 0, kind: input, shape index: {}]
  %s1 = inlined_call_operand.vmem [shape: f32[8,36], index: 1, kind: input, shape index: {}]
  %s2 = inlined_call_operand.vmem [shape: f32[8,1], index: 2, kind: input, shape index: {}]
  %s3 = inlined_call_operand.vmem [shape: f32[256,64], index: 3, kind: input, shape index: {}]
  %s4 = inlined_call_operand.vmem [shape: f32[2,256], index: 4, kind: input, shape index: {}]
  %s5 = inlined_call_operand.vmem [shape: f32[8,72], index: 5, kind: input, shape index: {}]
  %s6 = inlined_call_operand.vmem [shape: f32[8,1], index: 6, kind: input, shape index: {}]
  %s7 = inlined_call_operand.vmem [shape: f32[2,64], index: 7, kind: input, shape index: {}]
  %s8 = inlined_call_operand.vmem [shape: f32[2,72], index: 8, kind: input, shape index: {}]
  %s9 = inlined_call_operand.vmem [shape: f32[2,1], index: 9, kind: input, shape index: {}]
  %s10 = inlined_call_operand.vmem [shape: f32[2,2,2,2,64], index: 10, kind: input, shape index: {}]
  %s11 = inlined_call_operand.<no memory space> [shape: f32[1], index: 11, kind: input, shape index: {}]
  %s12 = inlined_call_operand.hbm [shape: f32[2,2,2,2,64], index: 12, kind: output, shape index: {}]
  %s13 = sld [smem:[#allocation0]]
  $region81: #{tpu_custom_call.1} parent=0
    _
  %s15 = ssub.s32 1, %s13
  %s16 = scalar_select 0, %s15, %s13
  %17 = sst [smem:[#allocation5]] %s11
  $region1: #{tpu_custom_call.1} parent=0
    #allocation6 [shape = 'u8[8192]{0}', space=vmem, size = 0x2000, scoped, tag = 'output window, operand 0']
    #allocation7 [shape = 's32[2]{0}', space=sflag, size = 0x8, scoped, tag = 'scoped memory for tpu_custom_call.1']
    %18 = vsyncpa [#allocation7], 0
    %s19 = scalar_lea.sflag [#allocation7], 1
    %20 = vsyncpa %s19, 0
    loop: start=0, step=1, limit=4
    $region2: #{tpu_custom_call.1} parent=1 // loop_pre_header
      _
    $region3: #{tpu_custom_call.1} parent=1 // loop_header
      %s22 = sphi 0, %s26
      %p23 = scmp.ge.s32.totalorder %s22, 4
      %s32 = sphi 0, %s34
      %s35 = sphi 0, %s32
      %s36 = sphi 0, %s35
      %s52 = sphi 0, %s36
      %s56 = sphi 0, %s56
      %s58 = sphi 0, %s56
      %s59 = sphi 0, %s58
      %s73 = sphi 0, %s59
      %s77 = sphi 0, %s77
      %s79 = sphi 0, %s77
      %s80 = sphi 0, %s79
      %s94 = sphi 0, %s80
      %s98 = sphi 0, %s98
      %s100 = sphi 0, %s98
      %s101 = sphi 0, %s100
      %s115 = sphi 0, %s101
      %s119 = sphi 0, %s119
      %s121 = sphi 0, %s119
      %s122 = sphi 0, %s121
      %s136 = sphi 0, %s122
      %s140 = sphi 0, %s140
      %s142 = sphi 0, %s140
      %s143 = sphi 0, %s142
      %s157 = sphi 0, %s143
      %s161 = sphi 0, %s161
      %s163 = sphi 0, %s161
      %s164 = sphi 0, %s163
      %s178 = sphi 0, %s164
      %s182 = sphi 0, %s182
      %s184 = sphi 0, %s182
      %s185 = sphi 0, %s184
      %s199 = sphi 0, %s185
      %s203 = sphi 0, %s203
      %s205 = sphi 0, %s203
      %s206 = sphi 0, %s205
      %s220 = sphi 0, %s206
      %s224 = sphi 0, %s224
      %s226 = sphi 0, %s224
      %s227 = sphi 0, %s226
      %s241 = sphi 0, %s227
      %s247 = sphi 0, %s249
      %s250 = sphi 0, %s247
      %s251 = sphi 0, %s250
      %s267 = sphi 0, %s251
      %s271 = sphi 0, %s271
      %s273 = sphi 0, %s271
      %s274 = sphi 0, %s273
      %s288 = sphi 0, %s274
      %s294 = sphi 0, %s296
      %s297 = sphi 0, %s294
      %s298 = sphi 0, %s297
      %s314 = sphi 0, %s298
    $region4: #{tpu_custom_call.1} parent=1 // loop_header_branch
      %25 = sbr.rel (%p23) target = $region8
    $region5: #{tpu_custom_call.1} parent=1 // loop_body
      %s27 = ssub.s32 %s22, 1
      %s28 = ssub.s32 %s22, 2
      %s29 = sadd.s32 %s22, 1
      %s30 = ssub.s32 %s22, %s29
      %p31 = scmp.eq.s32.totalorder %s30, 0
      %s33 = sadd.s32 %s32, 1
      %s34 = scalar_select %p31, %s32, %s33
      %p37 = pneg %p31
      %p38 = scmp.eq.s32.totalorder %s22, 1
      %p39 = por %p37, %p38
      %p40 = scmp.ne.s32.totalorder %s32, %s35
      %p41 = scmp.eq.s32.totalorder %s22, 0
      %p42 = por %p40, %p41
      %p43 = scmp.ne.s32.totalorder %s32, %s35
      %p44 = scmp.eq.s32.totalorder %s27, 1
      %p45 = por %p43, %p44
      %p46 = scmp.ne.s32.totalorder %s35, %s36
      %p47 = scmp.eq.s32.totalorder %s27, 0
      %p48 = por %p46, %p47
      %p49 = scmp.ne.s32.totalorder %s35, %s36
      %p50 = scmp.eq.s32.totalorder %s28, 1
      %p51 = por %p49, %p50
      %p53 = scmp.ne.s32.totalorder %s36, %s52
      %p54 = scmp.eq.s32.totalorder %s28, 0
      %p55 = por %p53, %p54
      %s57 = sadd.s32 %s56, 1
      %p60 = scmp.eq.s32.totalorder %s22, 1
      %p61 = scmp.ne.s32.totalorder %s56, %s58
      %p62 = scmp.eq.s32.totalorder %s22, 0
      %p63 = por %p61, %p62
      %p64 = scmp.ne.s32.totalorder %s56, %s58
      %p65 = scmp.eq.s32.totalorder %s27, 1
      %p66 = por %p64, %p65
      %p67 = scmp.ne.s32.totalorder %s58, %s59
      %p68 = scmp.eq.s32.totalorder %s27, 0
      %p69 = por %p67, %p68
      %p70 = scmp.ne.s32.totalorder %s58, %s59
      %p71 = scmp.eq.s32.totalorder %s28, 1
      %p72 = por %p70, %p71
      %p74 = scmp.ne.s32.totalorder %s59, %s73
      %p75 = scmp.eq.s32.totalorder %s28, 0
      %p76 = por %p74, %p75
      %s78 = sadd.s32 %s77, 1
      %p81 = scmp.eq.s32.totalorder %s22, 1
      %p82 = scmp.ne.s32.totalorder %s77, %s79
      %p83 = scmp.eq.s32.totalorder %s22, 0
      %p84 = por %p82, %p83
      %p85 = scmp.ne.s32.totalorder %s77, %s79
      %p86 = scmp.eq.s32.totalorder %s27, 1
      %p87 = por %p85, %p86
      %p88 = scmp.ne.s32.totalorder %s79, %s80
      %p89 = scmp.eq.s32.totalorder %s27, 0
      %p90 = por %p88, %p89
      %p91 = scmp.ne.s32.totalorder %s79, %s80
      %p92 = scmp.eq.s32.totalorder %s28, 1
      %p93 = por %p91, %p92
      %p95 = scmp.ne.s32.totalorder %s80, %s94
      %p96 = scmp.eq.s32.totalorder %s28, 0
      %p97 = por %p95, %p96
      %s99 = sadd.s32 %s98, 1
      %p102 = scmp.eq.s32.totalorder %s22, 1
      %p103 = scmp.ne.s32.totalorder %s98, %s100
      %p104 = scmp.eq.s32.totalorder %s22, 0
      %p105 = por %p103, %p104
      %p106 = scmp.ne.s32.totalorder %s98, %s100
      %p107 = scmp.eq.s32.totalorder %s27, 1
      %p108 = por %p106, %p107
      %p109 = scmp.ne.s32.totalorder %s100, %s101
      %p110 = scmp.eq.s32.totalorder %s27, 0
      %p111 = por %p109, %p110
      %p112 = scmp.ne.s32.totalorder %s100, %s101
      %p113 = scmp.eq.s32.totalorder %s28, 1
      %p114 = por %p112, %p113
      %p116 = scmp.ne.s32.totalorder %s101, %s115
      %p117 = scmp.eq.s32.totalorder %s28, 0
      %p118 = por %p116, %p117
      %s120 = sadd.s32 %s119, 1
      %p123 = scmp.eq.s32.totalorder %s22, 1
      %p124 = scmp.ne.s32.totalorder %s119, %s121
      %p125 = scmp.eq.s32.totalorder %s22, 0
      %p126 = por %p124, %p125
      %p127 = scmp.ne.s32.totalorder %s119, %s121
      %p128 = scmp.eq.s32.totalorder %s27, 1
      %p129 = por %p127, %p128
      %p130 = scmp.ne.s32.totalorder %s121, %s122
      %p131 = scmp.eq.s32.totalorder %s27, 0
      %p132 = por %p130, %p131
      %p133 = scmp.ne.s32.totalorder %s121, %s122
      %p134 = scmp.eq.s32.totalorder %s28, 1
      %p135 = por %p133, %p134
      %p137 = scmp.ne.s32.totalorder %s122, %s136
      %p138 = scmp.eq.s32.totalorder %s28, 0
      %p139 = por %p137, %p138
      %s141 = sadd.s32 %s140, 1
      %p144 = scmp.eq.s32.totalorder %s22, 1
      %p145 = scmp.ne.s32.totalorder %s140, %s142
      %p146 = scmp.eq.s32.totalorder %s22, 0
      %p147 = por %p145, %p146
      %p148 = scmp.ne.s32.totalorder %s140, %s142
      %p149 = scmp.eq.s32.totalorder %s27, 1
      %p150 = por %p148, %p149
      %p151 = scmp.ne.s32.totalorder %s142, %s143
      %p152 = scmp.eq.s32.totalorder %s27, 0
      %p153 = por %p151, %p152
      %p154 = scmp.ne.s32.totalorder %s142, %s143
      %p155 = scmp.eq.s32.totalorder %s28, 1
      %p156 = por %p154, %p155
      %p158 = scmp.ne.s32.totalorder %s143, %s157
      %p159 = scmp.eq.s32.totalorder %s28, 0
      %p160 = por %p158, %p159
      %s162 = sadd.s32 %s161, 1
      %p165 = scmp.eq.s32.totalorder %s22, 1
      %p166 = scmp.ne.s32.totalorder %s161, %s163
      %p167 = scmp.eq.s32.totalorder %s22, 0
      %p168 = por %p166, %p167
      %p169 = scmp.ne.s32.totalorder %s161, %s163
      %p170 = scmp.eq.s32.totalorder %s27, 1
      %p171 = por %p169, %p170
      %p172 = scmp.ne.s32.totalorder %s163, %s164
      %p173 = scmp.eq.s32.totalorder %s27, 0
      %p174 = por %p172, %p173
      %p175 = scmp.ne.s32.totalorder %s163, %s164
      %p176 = scmp.eq.s32.totalorder %s28, 1
      %p177 = por %p175, %p176
      %p179 = scmp.ne.s32.totalorder %s164, %s178
      %p180 = scmp.eq.s32.totalorder %s28, 0
      %p181 = por %p179, %p180
      %s183 = sadd.s32 %s182, 1
      %p186 = scmp.eq.s32.totalorder %s22, 1
      %p187 = scmp.ne.s32.totalorder %s182, %s184
      %p188 = scmp.eq.s32.totalorder %s22, 0
      %p189 = por %p187, %p188
      %p190 = scmp.ne.s32.totalorder %s182, %s184
      %p191 = scmp.eq.s32.totalorder %s27, 1
      %p192 = por %p190, %p191
      %p193 = scmp.ne.s32.totalorder %s184, %s185
      %p194 = scmp.eq.s32.totalorder %s27, 0
      %p195 = por %p193, %p194
      %p196 = scmp.ne.s32.totalorder %s184, %s185
      %p197 = scmp.eq.s32.totalorder %s28, 1
      %p198 = por %p196, %p197
      %p200 = scmp.ne.s32.totalorder %s185, %s199
      %p201 = scmp.eq.s32.totalorder %s28, 0
      %p202 = por %p200, %p201
      %s204 = sadd.s32 %s203, 1
      %p207 = scmp.eq.s32.totalorder %s22, 1
      %p208 = scmp.ne.s32.totalorder %s203, %s205
      %p209 = scmp.eq.s32.totalorder %s22, 0
      %p210 = por %p208, %p209
      %p211 = scmp.ne.s32.totalorder %s203, %s205
      %p212 = scmp.eq.s32.totalorder %s27, 1
      %p213 = por %p211, %p212
      %p214 = scmp.ne.s32.totalorder %s205, %s206
      %p215 = scmp.eq.s32.totalorder %s27, 0
      %p216 = por %p214, %p215
      %p217 = scmp.ne.s32.totalorder %s205, %s206
      %p218 = scmp.eq.s32.totalorder %s28, 1
      %p219 = por %p217, %p218
      %p221 = scmp.ne.s32.totalorder %s206, %s220
      %p222 = scmp.eq.s32.totalorder %s28, 0
      %p223 = por %p221, %p222
      %s225 = sadd.s32 %s224, 1
      %p228 = scmp.eq.s32.totalorder %s22, 1
      %p229 = scmp.ne.s32.totalorder %s224, %s226
      %p230 = scmp.eq.s32.totalorder %s22, 0
      %p231 = por %p229, %p230
      %p232 = scmp.ne.s32.totalorder %s224, %s226
      %p233 = scmp.eq.s32.totalorder %s27, 1
      %p234 = por %p232, %p233
      %p235 = scmp.ne.s32.totalorder %s226, %s227
      %p236 = scmp.eq.s32.totalorder %s27, 0
      %p237 = por %p235, %p236
      %p238 = scmp.ne.s32.totalorder %s226, %s227
      %p239 = scmp.eq.s32.totalorder %s28, 1
      %p240 = por %p238, %p239
      %p242 = scmp.ne.s32.totalorder %s227, %s241
      %p243 = scmp.eq.s32.totalorder %s28, 0
      %p244 = por %p242, %p243
      %s245 = ssub.s32 %s22, %s29
      %p246 = scmp.eq.s32.totalorder %s245, 0
      %s248 = sadd.s32 %s247, 1
      %s249 = scalar_select %p246, %s247, %s248
      %p252 = pneg %p246
      %p253 = scmp.eq.s32.totalorder %s22, 1
      %p254 = por %p252, %p253
      %p255 = scmp.ne.s32.totalorder %s247, %s250
      %p256 = scmp.eq.s32.totalorder %s22, 0
      %p257 = por %p255, %p256
      %p258 = scmp.ne.s32.totalorder %s247, %s250
      %p259 = scmp.eq.s32.totalorder %s27, 1
      %p260 = por %p258, %p259
      %p261 = scmp.ne.s32.totalorder %s250, %s251
      %p262 = scmp.eq.s32.totalorder %s27, 0
      %p263 = por %p261, %p262
      %p264 = scmp.ne.s32.totalorder %s250, %s251
      %p265 = scmp.eq.s32.totalorder %s28, 1
      %p266 = por %p264, %p265
      %p268 = scmp.ne.s32.totalorder %s251, %s267
      %p269 = scmp.eq.s32.totalorder %s28, 0
      %p270 = por %p268, %p269
      %s272 = sadd.s32 %s271, 1
      %p275 = scmp.eq.s32.totalorder %s22, 1
      %p276 = scmp.ne.s32.totalorder %s271, %s273
      %p277 = scmp.eq.s32.totalorder %s22, 0
      %p278 = por %p276, %p277
      %p279 = scmp.ne.s32.totalorder %s271, %s273
      %p280 = scmp.eq.s32.totalorder %s27, 1
      %p281 = por %p279, %p280
      %p282 = scmp.ne.s32.totalorder %s273, %s274
      %p283 = scmp.eq.s32.totalorder %s27, 0
      %p284 = por %p282, %p283
      %p285 = scmp.ne.s32.totalorder %s273, %s274
      %p286 = scmp.eq.s32.totalorder %s28, 1
      %p287 = por %p285, %p286
      %p289 = scmp.ne.s32.totalorder %s274, %s288
      %p290 = scmp.eq.s32.totalorder %s28, 0
      %p291 = por %p289, %p290
      %s292 = ssub.s32 %s22, %s29
      %p293 = scmp.eq.s32.totalorder %s292, 0
      %s295 = sadd.s32 %s294, 1
      %s296 = scalar_select %p293, %s294, %s295
      %p299 = pneg %p293
      %p300 = scmp.eq.s32.totalorder %s22, 1
      %p301 = por %p299, %p300
      %p302 = scmp.ne.s32.totalorder %s294, %s297
      %p303 = scmp.eq.s32.totalorder %s22, 0
      %p304 = por %p302, %p303
      %p305 = scmp.ne.s32.totalorder %s294, %s297
      %p306 = scmp.eq.s32.totalorder %s27, 1
      %p307 = por %p305, %p306
      %p308 = scmp.ne.s32.totalorder %s297, %s298
      %p309 = scmp.eq.s32.totalorder %s27, 0
      %p310 = por %p308, %p309
      %p311 = scmp.ne.s32.totalorder %s297, %s298
      %p312 = scmp.eq.s32.totalorder %s28, 1
      %p313 = por %p311, %p312
      %p315 = scmp.ne.s32.totalorder %s298, %s314
      %p316 = scmp.eq.s32.totalorder %s28, 0
      %p317 = por %p315, %p316
      %p318 = scmp.le.s32.totalorder 1, %s22
      %p319 = scmp.lt.s32.totalorder %s22, 3
      %p320 = pnand %p318, %p319
      %p321 = pneg %p320
      // Predicated region
      $region9: #{tpu_custom_call.1} parent=5 // pred_check
        _
      $region10: #{tpu_custom_call.1} parent=5 // pred_check_branch
        %323 = sbr.rel (%p320) target = $region12
      $region11: #{tpu_custom_call.1} parent=5 // pred_region
        %s324 = ssub.s32 %s22, 1
        // Predicated region
        $region13: #{tpu_custom_call.1} parent=11 // pred_check
          %p325 = pneg %p69
        $region14: #{tpu_custom_call.1} parent=11 // pred_check_branch
          %327 = sbr.rel (%p325) target = $region16
        $region15: #{tpu_custom_call.1} parent=11 // pred_region
          _
        $region16: #{tpu_custom_call.1} parent=11 // pred_fallthru
          _
        // Predicated region
        $region17: #{tpu_custom_call.1} parent=11 // pred_check
          %p328 = pneg %p90
        $region18: #{tpu_custom_call.1} parent=11 // pred_check_branch
          %330 = sbr.rel (%p328) target = $region20
        $region19: #{tpu_custom_call.1} parent=11 // pred_region
          _
        $region20: #{tpu_custom_call.1} parent=11 // pred_fallthru
          _
        // Predicated region
        $region21: #{tpu_custom_call.1} parent=11 // pred_check
          %p331 = pneg %p111
        $region22: #{tpu_custom_call.1} parent=11 // pred_check_branch
          %333 = sbr.rel (%p331) target = $region24
        $region23: #{tpu_custom_call.1} parent=11 // pred_region
          _
        $region24: #{tpu_custom_call.1} parent=11 // pred_fallthru
          _
        // Predicated region
        $region25: #{tpu_custom_call.1} parent=11 // pred_check
          %p334 = pneg %p132
        $region26: #{tpu_custom_call.1} parent=11 // pred_check_branch
          %336 = sbr.rel (%p334) target = $region28
        $region27: #{tpu_custom_call.1} parent=11 // pred_region
          _
        $region28: #{tpu_custom_call.1} parent=11 // pred_fallthru
          _
        // Predicated region
        $region29: #{tpu_custom_call.1} parent=11 // pred_check
          %p337 = pneg %p153
        $region30: #{tpu_custom_call.1} parent=11 // pred_check_branch
          %339 = sbr.rel (%p337) target = $region32
        $region31: #{tpu_custom_call.1} parent=11 // pred_region
          _
        $region32: #{tpu_custom_call.1} parent=11 // pred_fallthru
          _
        // Predicated region
        $region33: #{tpu_custom_call.1} parent=11 // pred_check
          %p340 = pneg %p174
        $region34: #{tpu_custom_call.1} parent=11 // pred_check_branch
          %342 = sbr.rel (%p340) target = $region36
        $region35: #{tpu_custom_call.1} parent=11 // pred_region
          _
        $region36: #{tpu_custom_call.1} parent=11 // pred_fallthru
          _
        // Predicated region
        $region37: #{tpu_custom_call.1} parent=11 // pred_check
          %p343 = pneg %p195
        $region38: #{tpu_custom_call.1} parent=11 // pred_check_branch
          %345 = sbr.rel (%p343) target = $region40
        $region39: #{tpu_custom_call.1} parent=11 // pred_region
          _
        $region40: #{tpu_custom_call.1} parent=11 // pred_fallthru
          _
        // Predicated region
        $region41: #{tpu_custom_call.1} parent=11 // pred_check
          %p346 = pneg %p216
        $region42: #{tpu_custom_call.1} parent=11 // pred_check_branch
          %348 = sbr.rel (%p346) target = $region44
        $region43: #{tpu_custom_call.1} parent=11 // pred_region
          _
        $region44: #{tpu_custom_call.1} parent=11 // pred_fallthru
          _
        // Predicated region
        $region45: #{tpu_custom_call.1} parent=11 // pred_check
          %p349 = pneg %p237
        $region46: #{tpu_custom_call.1} parent=11 // pred_check_branch
          %351 = sbr.rel (%p349) target = $region48
        $region47: #{tpu_custom_call.1} parent=11 // pred_region
          _
        $region48: #{tpu_custom_call.1} parent=11 // pred_fallthru
          _
        // Predicated region
        $region49: #{tpu_custom_call.1} parent=11 // pred_check
          %p352 = pneg %p284
        $region50: #{tpu_custom_call.1} parent=11 // pred_check_branch
          %354 = sbr.rel (%p352) target = $region52
        $region51: #{tpu_custom_call.1} parent=11 // pred_region
          _
        $region52: #{tpu_custom_call.1} parent=11 // pred_fallthru
          _
      $region12: #{tpu_custom_call.1} parent=5 // pred_fallthru
        _
      %p355 = scmp.lt.s32.totalorder %s22, 2
      // Predicated region
      $region53: #{tpu_custom_call.1} parent=5 // pred_check
        %p356 = pneg %p355
      $region54: #{tpu_custom_call.1} parent=5 // pred_check_branch
        %358 = sbr.rel (%p356) target = $region56
      $region55: #{tpu_custom_call.1} parent=5 // pred_region
        // Predicated region
        $region57: #{tpu_custom_call.1} parent=55 // pred_check
          %p359 = pneg %p42
        $region58: #{tpu_custom_call.1} parent=55 // pred_check_branch
          %361 = sbr.rel (%p359) target = $region60
        $region59: #{tpu_custom_call.1} parent=55 // pred_region
          %p362 = scmp.lt.s32.totalorder %s22, 1
          %s363 = scalar_select %p362, %s22, 1
          %s364 = smul.addr %s363, 2
          %s365 = smul.addr %s364, 4
          %s366 = scalar_lea.vmem %s0, %s365
        $region60: #{tpu_custom_call.1} parent=55 // pred_fallthru
          _
        // Predicated region
        $region61: #{tpu_custom_call.1} parent=55 // pred_check
          %p367 = pneg %p257
        $region62: #{tpu_custom_call.1} parent=55 // pred_check_branch
          %369 = sbr.rel (%p367) target = $region64
        $region63: #{tpu_custom_call.1} parent=55 // pred_region
          %p370 = scmp.lt.s32.totalorder %s22, 1
          %s371 = scalar_select %p370, %s22, 1
          %s372 = smul.addr %s371, 4
          %s373 = smul.addr %s372, 2
          %s374 = scalar_lea.vmem %s10, %s373
        $region64: #{tpu_custom_call.1} parent=55 // pred_fallthru
          _
      $region56: #{tpu_custom_call.1} parent=5 // pred_fallthru
        _
      %p375 = scmp.le.s32.totalorder 1, %s22
      %p376 = scmp.lt.s32.totalorder %s22, 3
      %p377 = pnand %p375, %p376
      %p378 = pneg %p377
      // Predicated region
      $region65: #{tpu_custom_call.1} parent=5 // pred_check
        _
      $region66: #{tpu_custom_call.1} parent=5 // pred_check_branch
        %380 = sbr.rel (%p377) target = $region68
      $region67: #{tpu_custom_call.1} parent=5 // pred_region
        %s381 = ssub.s32 %s22, 1
        %p382 = scmp.lt.s32.totalorder %s27, 1
        %s383 = scalar_select %p382, %s27, 1
        %s384 = smul.addr %s383, 2
        %s385 = smul.addr %s384, 4
        %s386 = scalar_lea.vmem %s0, %s385
        %p387 = pneg %p48
        %p388 = pneg %p45
        %p389 = pneg %p69
        %p390 = pneg %p66
        %p391 = pneg %p90
        %p392 = pneg %p87
        %p393 = pneg %p111
        %p394 = pneg %p108
        %p395 = pneg %p132
        %p396 = pneg %p129
        %p397 = pneg %p153
        %p398 = pneg %p150
        %p399 = pneg %p174
        %p400 = pneg %p171
        %p401 = pneg %p195
        %p402 = pneg %p192
        %p403 = pneg %p216
        %p404 = pneg %p213
        %p405 = pneg %p237
        %p406 = pneg %p234
        %p407 = scmp.lt.s32.totalorder %s27, 1
        %s408 = scalar_select %p407, %s27, 1
        %s409 = smul.addr %s408, 4
        %s410 = smul.addr %s409, 2
        %s411 = scalar_lea.vmem %s10, %s410
        %p412 = pneg %p263
        %p413 = pneg %p260
        %p414 = pneg %p284
        %p415 = pneg %p281
        %p416 = pneg %p310
        %p417 = pneg %p307
        %s418 = sand.u32 %s297, 1
        %s419 = scalar_lea.sflag [#allocation7], %s418
        %s420 = sand.u32 %s297, 1
        %s421 = smul.addr %s420, 8
        %s422 = scalar_lea.vmem [#allocation6], %s421
        %p423 = scmp.lt.s32.totalorder %s27, 1
        %s424 = scalar_select %p423, %s27, 1
        %s425 = smul.addr %s424, 2
        %s426 = smul.addr %s425, 4
        %s427 = scalar_lea.vmem %s0, %s426
        %p428 = scmp.lt.s32.totalorder %s27, 1
        %s429 = scalar_select %p428, %s27, 1
        %s430 = smul.addr %s429, 4
        %s431 = smul.addr %s430, 2
        %s432 = scalar_lea.vmem %s10, %s431
        %v433 = vld [vmem:[%s4] ss:$2 sm:$0x3]
        %s434 = scalar_lea.vmem %s4, 1
        %v435 = vld [vmem:[%s434] ss:$2 sm:$0x3]
        %v436 = vld [vmem:[%s7] sm:$0x1]
        %v437 = vld [vmem:[%s7 + $0x1] sm:$0x1]
        %438 = vst [vmem:[#allocation2] sm:$0xff] 0.0
        %vm439 = vcmask 273408
        %440 = vst.msk [vmem:[#allocation2 + $0x8] sm:$0xf] %vm439, 0.0
        %v441 = vld [vmem:[%s427] sm:$0xff]
        %443 = vrot.lane.b32.xlu0 %v441, 17
        %v444 = vpop.permute.xlu0 %443
        %v445 = vrot.slane %v444, 4
        %vm446 = vcmask 138240
        %v447 = vsel %vm446, %v445, %v444
        %vm450 = vcmask 1043592
        %vm451 = vcmask 1047556
        %vm452 = vmor %vm451, %vm450
        %453 = vst.msk [vmem:[#allocation2] sm:$0xff] %vm452, %v447
        %vm454 = vcmask 134144
        %455 = vst.msk [vmem:[#allocation2 + $0x8] sm:$0xf] %vm454, %v445
        %v456 = vld [vmem:[#allocation2] sm:$0xff]
        %v458 = vlaneseq
        %v459 = vshrl.u32 %v458, 7
        %v460 = vsub.s32 0, %v459
        %v461 = vrot.slane %v433, %v460
        %v462 = vlaneseq
        %v463 = vshrl.u32 %v462, 7
        %v464 = vsub.s32 1, %v463
        %v465 = vrot.slane %v433, %v464
        %v466 = vcombine.low %v461, %v465
        %v468 = vmul.f32 %v456, %v466
        %v469 = vld [vmem:[#allocation2 + $0x8] sm:$0xf]
        %v471 = vlaneseq
        %v472 = vshrl.u32 %v471, 7
        %v473 = vsub.s32 0, %v472
        %v474 = vrot.slane %v435, %v473
        %v475 = vlaneseq
        %v476 = vshrl.u32 %v475, 7
        %v477 = vsub.s32 1, %v476
        %v478 = vrot.slane %v435, %v477
        %v479 = vcombine.low %v474, %v478
        %480 = vrot.lane.b32.xlu0 %v479, 2
        %v481 = vpop.permute.xlu0 %480
        %v482 = vrot.slane %v481, 4
        %vm483 = vcmask 15360
        %v484 = vsel %vm483, %v482, %v481
        %v487 = vmul.f32 %v456, %v484
        %v488 = vmul.f32 %v469, %v482
        %489 = vrot.lane.b32.xlu0 %v466, 16
        %v490 = vpop.permute.xlu0 %489
        %v491 = vrot.slane %v490, 4
        %vm492 = vcmask 130048
        %v493 = vsel %vm492, %v491, %v490
        %v496 = vmul.f32 %v456, %v493
        %v497 = vmul.f32 %v469, %v491
        %498 = vrot.lane.b32.xlu0 %v479, 18
        %v499 = vpop.permute.xlu0 %498
        %v500 = vrot.slane %v499, 4
        %vm501 = vcmask 146432
        %v502 = vsel %vm501, %v500, %v499
        %v505 = vmul.f32 %v456, %v502
        %v506 = vmul.f32 %v469, %v500
        %507 = vrot.lane.b32.xlu0 %v466, 32
        %v508 = vpop.permute.xlu0 %507
        %v509 = vrot.slane %v508, 4
        %vm510 = vcmask 261120
        %v511 = vsel %vm510, %v509, %v508
        %v514 = vmul.f32 %v456, %v511
        %v515 = vmul.f32 %v469, %v509
        %516 = vrot.lane.b32.xlu0 %v479, 34
        %v517 = vpop.permute.xlu0 %516
        %v518 = vrot.slane %v517, 4
        %vm519 = vcmask 277504
        %v520 = vsel %vm519, %v518, %v517
        %v523 = vmul.f32 %v456, %v520
        %v524 = vmul.f32 %v469, %v518
        %v526 = vcombine.high %v468, %v468
        %v530 = vcombine.low %v456, %v456
        %v531 = vcombine.low %v469, %v469
        %532 = vrot.lane.b32.xlu0 %v530, 127
        %v533 = vpop.permute.xlu0 %532
        %534 = vrot.lane.b32.xlu0 %v456, 127
        %v535 = vpop.permute.xlu0 %534
        %536 = vrot.lane.b32.xlu0 %v531, 127
        %v537 = vpop.permute.xlu0 %536
        %vm538 = vcmask 1039360
        %v539 = vsel %vm538, %v533, %v535
        %v540 = vsel %vm538, %v535, %v537
        %v545 = vcombine.high %v487, %v487
        %546 = vrot.lane.b32.xlu0 %v487, 126
        %v547 = vpop.permute.xlu0 %546
        %548 = vrot.lane.b32.xlu0 %v545, 126
        %v549 = vpop.permute.xlu0 %548
        %550 = vrot.lane.b32.xlu0 %v488, 126
        %v551 = vpop.permute.xlu0 %550
        %vm552 = vcmask 1031168
        %v553 = vsel %vm552, %v547, %v549
        %v554 = vsel %vm552, %v549, %v551
        %v559 = vcombine.low %v496, %v496
        %v560 = vcombine.low %v497, %v497
        %561 = vrot.lane.b32.xlu0 %v559, 112
        %v562 = vpop.permute.xlu0 %561
        %563 = vrot.lane.b32.xlu0 %v496, 112
        %v564 = vpop.permute.xlu0 %563
        %565 = vrot.lane.b32.xlu0 %v560, 112
        %v566 = vpop.permute.xlu0 %565
        %vm567 = vcmask 916480
        %v568 = vsel %vm567, %v562, %v564
        %v569 = vsel %vm567, %v564, %v566
        %v572 = vcombine.high %v456, %v456
        %573 = vrot.lane.b32.xlu0 %v456, 111
        %v574 = vpop.permute.xlu0 %573
        %575 = vrot.lane.b32.xlu0 %v572, 111
        %v576 = vpop.permute.xlu0 %575
        %577 = vrot.lane.b32.xlu0 %v469, 111
        %v578 = vpop.permute.xlu0 %577
        %vm579 = vcmask 908288
        %v580 = vsel %vm579, %v574, %v576
        %v581 = vsel %vm579, %v576, %v578
        %v586 = vcombine.low %v505, %v505
        %v587 = vcombine.low %v506, %v506
        %588 = vrot.lane.b32.xlu0 %v586, 110
        %v589 = vpop.permute.xlu0 %588
        %590 = vrot.lane.b32.xlu0 %v505, 110
        %v591 = vpop.permute.xlu0 %590
        %592 = vrot.lane.b32.xlu0 %v587, 110
        %v593 = vpop.permute.xlu0 %592
        %vm594 = vcmask 900096
        %v595 = vsel %vm594, %v589, %v591
        %v596 = vsel %vm594, %v591, %v593
        %v601 = vcombine.high %v514, %v514
        %602 = vrot.lane.b32.xlu0 %v514, 96
        %v603 = vpop.permute.xlu0 %602
        %604 = vrot.lane.b32.xlu0 %v601, 96
        %v605 = vpop.permute.xlu0 %604
        %606 = vrot.lane.b32.xlu0 %v515, 96
        %v607 = vpop.permute.xlu0 %606
        %vm608 = vcmask 785408
        %v609 = vsel %vm608, %v603, %v605
        %v610 = vsel %vm608, %v605, %v607
        %613 = vrot.lane.b32.xlu0 %v530, 95
        %v614 = vpop.permute.xlu0 %613
        %615 = vrot.lane.b32.xlu0 %v456, 95
        %v616 = vpop.permute.xlu0 %615
        %617 = vrot.lane.b32.xlu0 %v531, 95
        %v618 = vpop.permute.xlu0 %617
        %vm619 = vcmask 777216
        %v620 = vsel %vm619, %v614, %v616
        %v621 = vsel %vm619, %v616, %v618
        %v626 = vcombine.high %v523, %v523
        %627 = vrot.lane.b32.xlu0 %v523, 94
        %v628 = vpop.permute.xlu0 %627
        %629 = vrot.lane.b32.xlu0 %v626, 94
        %v630 = vpop.permute.xlu0 %629
        %631 = vrot.lane.b32.xlu0 %v524, 94
        %v632 = vpop.permute.xlu0 %631
        %vm633 = vcmask 769024
        %v634 = vsel %vm633, %v628, %v630
        %v635 = vsel %vm633, %v630, %v632
        %vm636 = vcmask 1043456
        %v637 = vsel %vm636, %v468, %v539
        %v638 = vsel %vm636, %v526, %v540
        %v639 = vsel %vm636, %v553, %v568
        %v640 = vsel %vm636, %v554, %v569
        %v641 = vsel %vm636, %v580, %v595
        %v642 = vsel %vm636, %v581, %v596
        %v643 = vsel %vm636, %v609, %v620
        %v644 = vsel %vm636, %v610, %v621
        %v645 = vld [vmem:[%s1] sm:$0xff]
        %v646 = vld [vmem:[%s2] sm:$0xff]
        %648 = vset.pattern.permute.xlu0 0
        %649 = vperm.xlu0 %648, %v646
        %v650 = vpop.permute.xlu0 %649
        %vm652 = vcmask 293888
        %v654 = vsel %vm652, %v645, 0
        %v656 = vsel %vm636, %v634, 0
        %v658 = vsel %vm636, %v635, 0
        %660 = vmatprep.subr.mxu0 %v638
        %661 = vmatpush1.msra.mxu0 %v637
        %662 = vmatprep.subr.mxu0 %v640
        %663 = vmatpush1.msra.mxu0 %v639
        %664 = vmatprep.subr.mxu0 %v642
        %665 = vmatpush1.msra.mxu0 %v641
        %666 = vmatprep.subr.mxu0 %v644
        %667 = vmatpush1.msra.mxu0 %v643
        %668 = vmatprep.subr.mxu0 %v658
        %669 = vmatpush1.msra.mxu0 %v656
        %670 = vmatprep.subr.mxu0 0.0
        %671 = vmatpush1.msra.mxu0 0.0
        %672 = vmatprep.subr.mxu0 0.0
        %673 = vmatpush1.msra.mxu0 0.0
        %674 = vmatprep.subr.mxu0 0.0
        %675 = vmatpush1.msra.mxu0 0.0
        %676 = vmatprep.subr.mxu0 0.0
        %677 = vmatpush1.msra.mxu0 0.0
        %678 = vmatprep.subr.mxu0 0.0
        %679 = vmatpush1.msra.mxu0 0.0
        %680 = vmatprep.subr.mxu0 0.0
        %681 = vmatpush1.msra.mxu0 0.0
        %682 = vmatprep.subr.mxu0 0.0
        %683 = vmatpush1.msra.mxu0 0.0
        %684 = vmatprep.subr.mxu0 0.0
        %685 = vmatpush1.msra.mxu0 0.0
        %686 = vmatprep.subr.mxu0 0.0
        %687 = vmatpush1.msra.mxu0 0.0
        %688 = vmatprep.subr.mxu0 0.0
        %689 = vmatpush1.msra.mxu0 0.0
        %690 = vmatprep.subr.mxu0 0.0
        %691 = vmatpush1.msra.mxu0 0.0
        %692 = vmatprep.subr.mxu0 0.0
        %693 = vmatpush1.msra.mxu0 0.0
        %694 = vmatprep.subr.mxu0 0.0
        %695 = vmatpush1.msra.mxu0 0.0
        %696 = vmatprep.subr.mxu0 0.0
        %697 = vmatpush1.msra.mxu0 0.0
        %698 = vmatprep.subr.mxu0 0.0
        %699 = vmatpush1.msra.mxu0 0.0
        %700 = vmatprep.subr.mxu0 0.0
        %701 = vmatpush1.msra.mxu0 0.0
        %702 = vmatprep.subr.mxu0 0.0
        %703 = vmatpush1.msra.mxu0 0.0
        %704 = vmatprep.subr.mxu0 0.0
        %705 = vmatpush1.msra.mxu0 0.0
        %706 = vmatprep.subr.mxu0 0.0
        %707 = vmatpush1.msra.mxu0 0.0
        %708 = vmatprep.subr.mxu0 0.0
        %709 = vmatpush1.msra.mxu0 0.0
        %710 = vmatprep.subr.mxu0 0.0
        %711 = vmatpush1.msra.mxu0 0.0
        %712 = vmatprep.subr.mxu0 0.0
        %713 = vmatpush1.msra.mxu0 0.0
        %714 = vmatprep.subr.mxu0 0.0
        %715 = vmatpush1.msra.mxu0 0.0
        %716 = vmatprep.subr.mxu0 0.0
        %717 = vmatpush1.msra.mxu0 0.0
        %718 = vmatprep.subr.mxu0 0.0
        %719 = vmatpush1.msra.mxu0 0.0
        %720 = vmatprep.subr.mxu0 0.0
        %721 = vmatpush1.msra.mxu0 0.0
        %722 = vmatprep.subr.mxu0 0.0
        %723 = vmatpush1.msra.mxu0 0.0
        %724 = vmatprep.mubr.f32.mxu0 0.0
        %725 = vmatmul.mubr.f32.gmra.mrb[0].mxu0 %v654
        %v726 = vpop.f32.mrb[0].mxu0
        %v727 = vadd.f32 %v650, %v726
        %v728 = vpop.f32.mrb[0].mxu0
        %v729 = vadd.f32 %v650, %v728
        %730 = vdwg.mxu0
        %v731 = vmax.f32 %v727, 0.0
        %v732 = vmax.f32 %v729, 0.0
        %v733 = vld [vmem:[%s3] sm:$0xff]
        %v734 = vld [vmem:[%s3 + $0x8] sm:$0xff]
        %v735 = vld [vmem:[%s3 + $0x10] sm:$0xff]
        %v736 = vld [vmem:[%s3 + $0x18] sm:$0xff]
        %v737 = vld [vmem:[%s3 + $0x20] sm:$0xff]
        %v738 = vld [vmem:[%s3 + $0x28] sm:$0xff]
        %v739 = vld [vmem:[%s3 + $0x30] sm:$0xff]
        %v740 = vld [vmem:[%s3 + $0x38] sm:$0xff]
        %v741 = vld [vmem:[%s3 + $0x40] sm:$0xff]
        %v742 = vld [vmem:[%s3 + $0x48] sm:$0xff]
        %v743 = vld [vmem:[%s3 + $0x50] sm:$0xff]
        %v744 = vld [vmem:[%s3 + $0x58] sm:$0xff]
        %v745 = vld [vmem:[%s3 + $0x60] sm:$0xff]
        %v746 = vld [vmem:[%s3 + $0x68] sm:$0xff]
        %v747 = vld [vmem:[%s3 + $0x70] sm:$0xff]
        %v748 = vld [vmem:[%s3 + $0x78] sm:$0xff]
        %v749 = vld [vmem:[%s3 + $0x80] sm:$0xff]
        %v750 = vld [vmem:[%s3 + $0x88] sm:$0xff]
        %v751 = vld [vmem:[%s3 + $0x90] sm:$0xff]
        %v752 = vld [vmem:[%s3 + $0x98] sm:$0xff]
        %v753 = vld [vmem:[%s3 + $0xa0] sm:$0xff]
        %v754 = vld [vmem:[%s3 + $0xa8] sm:$0xff]
        %v755 = vld [vmem:[%s3 + $0xb0] sm:$0xff]
        %v756 = vld [vmem:[%s3 + $0xb8] sm:$0xff]
        %v757 = vld [vmem:[%s3 + $0xc0] sm:$0xff]
        %v758 = vld [vmem:[%s3 + $0xc8] sm:$0xff]
        %v759 = vld [vmem:[%s3 + $0xd0] sm:$0xff]
        %v760 = vld [vmem:[%s3 + $0xd8] sm:$0xff]
        %v761 = vld [vmem:[%s3 + $0xe0] sm:$0xff]
        %v762 = vld [vmem:[%s3 + $0xe8] sm:$0xff]
        %v763 = vld [vmem:[%s3 + $0xf0] sm:$0xff]
        %v764 = vld [vmem:[%s3 + $0xf8] sm:$0xff]
        %765 = vmatprep.subr.mxu0 0.0
        %766 = vmatpush1.msra.mxu0 %v733
        %767 = vmatprep.subr.mxu0 0.0
        %768 = vmatpush1.msra.mxu0 %v734
        %769 = vmatprep.subr.mxu0 0.0
        %770 = vmatpush1.msra.mxu0 %v735
        %771 = vmatprep.subr.mxu0 0.0
        %772 = vmatpush1.msra.mxu0 %v736
        %773 = vmatprep.subr.mxu0 0.0
        %774 = vmatpush1.msra.mxu0 %v737
        %775 = vmatprep.subr.mxu0 0.0
        %776 = vmatpush1.msra.mxu0 %v738
        %777 = vmatprep.subr.mxu0 0.0
        %778 = vmatpush1.msra.mxu0 %v739
        %779 = vmatprep.subr.mxu0 0.0
        %780 = vmatpush1.msra.mxu0 %v740
        %781 = vmatprep.subr.mxu0 0.0
        %782 = vmatpush1.msra.mxu0 %v741
        %783 = vmatprep.subr.mxu0 0.0
        %784 = vmatpush1.msra.mxu0 %v742
        %785 = vmatprep.subr.mxu0 0.0
        %786 = vmatpush1.msra.mxu0 %v743
        %787 = vmatprep.subr.mxu0 0.0
        %788 = vmatpush1.msra.mxu0 %v744
        %789 = vmatprep.subr.mxu0 0.0
        %790 = vmatpush1.msra.mxu0 %v745
        %791 = vmatprep.subr.mxu0 0.0
        %792 = vmatpush1.msra.mxu0 %v746
        %793 = vmatprep.subr.mxu0 0.0
        %794 = vmatpush1.msra.mxu0 %v747
        %795 = vmatprep.subr.mxu0 0.0
        %796 = vmatpush1.msra.mxu0 %v748
        %797 = vmatprep.subr.mxu0 0.0
        %798 = vmatpush1.msra.mxu0 %v749
        %799 = vmatprep.subr.mxu0 0.0
        %800 = vmatpush1.msra.mxu0 %v750
        %801 = vmatprep.subr.mxu0 0.0
        %802 = vmatpush1.msra.mxu0 %v751
        %803 = vmatprep.subr.mxu0 0.0
        %804 = vmatpush1.msra.mxu0 %v752
        %805 = vmatprep.subr.mxu0 0.0
        %806 = vmatpush1.msra.mxu0 %v753
        %807 = vmatprep.subr.mxu0 0.0
        %808 = vmatpush1.msra.mxu0 %v754
        %809 = vmatprep.subr.mxu0 0.0
        %810 = vmatpush1.msra.mxu0 %v755
        %811 = vmatprep.subr.mxu0 0.0
        %812 = vmatpush1.msra.mxu0 %v756
        %813 = vmatprep.subr.mxu0 0.0
        %814 = vmatpush1.msra.mxu0 %v757
        %815 = vmatprep.subr.mxu0 0.0
        %816 = vmatpush1.msra.mxu0 %v758
        %817 = vmatprep.subr.mxu0 0.0
        %818 = vmatpush1.msra.mxu0 %v759
        %819 = vmatprep.subr.mxu0 0.0
        %820 = vmatpush1.msra.mxu0 %v760
        %821 = vmatprep.subr.mxu0 0.0
        %822 = vmatpush1.msra.mxu0 %v761
        %823 = vmatprep.subr.mxu0 0.0
        %824 = vmatpush1.msra.mxu0 %v762
        %825 = vmatprep.subr.mxu0 0.0
        %826 = vmatpush1.msra.mxu0 %v763
        %827 = vmatprep.subr.mxu0 0.0
        %828 = vmatpush1.msra.mxu0 %v764
        %829 = vmatprep.mubr.f32.mxu0 %v732
        %830 = vmatmul.mubr.f32.gmra.mrb[0].mxu0 %v731
        %v831 = vpop.f32.mrb[0].mxu0
        %v832 = vadd.f32 0.0, %v831
        %v833 = vpop.f32.mrb[0].mxu0
        %834 = vdwg.mxu0
        %vm835 = vcmask 670720
        %836 = vst.msk [vmem:[#allocation3] sm:$0xff] %vm835, 0.0
        %838 = vrot.lane.b32.xlu0 %v832, 9
        %v839 = vpop.permute.xlu0 %838
        %vm841 = vcmask 597064
        %842 = vst.msk [vmem:[#allocation3] sm:$0xff] %vm841, %v839
        %v843 = vld [vmem:[#allocation3] sm:$0xff]
        %v844 = vlaneseq
        %v845 = vshrl.u32 %v844, 7
        %v846 = vsub.s32 0, %v845
        %v847 = vrot.slane %v436, %v846
        %v848 = vmul.f32 %v843, %v847
        %v849 = vlaneseq
        %v850 = vshrl.u32 %v849, 7
        %v851 = vsub.s32 0, %v850
        %v852 = vrot.slane %v437, %v851
        %854 = vrot.lane.b32.xlu0 %v852, 2
        %v855 = vpop.permute.xlu0 %854
        %v857 = vmul.f32 %v843, %v855
        %859 = vrot.lane.b32.xlu0 %v847, 8
        %v860 = vpop.permute.xlu0 %859
        %v862 = vmul.f32 %v843, %v860
        %863 = vrot.lane.b32.xlu0 %v852, 10
        %v864 = vpop.permute.xlu0 %863
        %v866 = vmul.f32 %v843, %v864
        %867 = vrot.lane.b32.xlu0 %v847, 16
        %v868 = vpop.permute.xlu0 %867
        %v870 = vmul.f32 %v843, %v868
        %871 = vrot.lane.b32.xlu0 %v852, 18
        %v872 = vpop.permute.xlu0 %871
        %v874 = vmul.f32 %v843, %v872
        %876 = vrot.lane.b32.xlu0 %v843, 127
        %v877 = vpop.permute.xlu0 %876
        %880 = vrot.lane.b32.xlu0 %v857, 126
        %v881 = vpop.permute.xlu0 %880
        %884 = vrot.lane.b32.xlu0 %v862, 120
        %v885 = vpop.permute.xlu0 %884
        %887 = vrot.lane.b32.xlu0 %v843, 119
        %v888 = vpop.permute.xlu0 %887
        %891 = vrot.lane.b32.xlu0 %v866, 118
        %v892 = vpop.permute.xlu0 %891
        %895 = vrot.lane.b32.xlu0 %v870, 112
        %v896 = vpop.permute.xlu0 %895
        %898 = vrot.lane.b32.xlu0 %v843, 111
        %v899 = vpop.permute.xlu0 %898
        %902 = vrot.lane.b32.xlu0 %v874, 110
        %v903 = vpop.permute.xlu0 %902
        %v905 = vld [vmem:[%s5] sm:$0xff]
        %v906 = vld [vmem:[%s6] sm:$0xff]
        %908 = vset.pattern.permute.xlu0 0
        %909 = vperm.xlu0 %908, %v906
        %v910 = vpop.permute.xlu0 %909
        %vm912 = vcmask 588800
        %v914 = vsel %vm912, %v905, 0
        %916 = vmatprep.subr.mxu0 0.0
        %917 = vmatpush1.msra.mxu0 %v848
        %918 = vmatprep.subr.mxu0 0.0
        %919 = vmatpush1.msra.mxu0 %v877
        %920 = vmatprep.subr.mxu0 0.0
        %921 = vmatpush1.msra.mxu0 %v881
        %922 = vmatprep.subr.mxu0 0.0
        %923 = vmatpush1.msra.mxu0 %v885
        %924 = vmatprep.subr.mxu0 0.0
        %925 = vmatpush1.msra.mxu0 %v888
        %926 = vmatprep.subr.mxu0 0.0
        %927 = vmatpush1.msra.mxu0 %v892
        %928 = vmatprep.subr.mxu0 0.0
        %929 = vmatpush1.msra.mxu0 %v896
        %930 = vmatprep.subr.mxu0 0.0
        %931 = vmatpush1.msra.mxu0 %v899
        %932 = vmatprep.subr.mxu0 0.0
        %933 = vmatpush1.msra.mxu0 %v903
        %934 = vmatprep.subr.mxu0 0.0
        %935 = vmatpush1.msra.mxu0 0.0
        %936 = vmatprep.subr.mxu0 0.0
        %937 = vmatpush1.msra.mxu0 0.0
        %938 = vmatprep.subr.mxu0 0.0
        %939 = vmatpush1.msra.mxu0 0.0
        %940 = vmatprep.subr.mxu0 0.0
        %941 = vmatpush1.msra.mxu0 0.0
        %942 = vmatprep.subr.mxu0 0.0
        %943 = vmatpush1.msra.mxu0 0.0
        %944 = vmatprep.subr.mxu0 0.0
        %945 = vmatpush1.msra.mxu0 0.0
        %946 = vmatprep.subr.mxu0 0.0
        %947 = vmatpush1.msra.mxu0 0.0
        %948 = vmatprep.subr.mxu0 0.0
        %949 = vmatpush1.msra.mxu0 0.0
        %950 = vmatprep.subr.mxu0 0.0
        %951 = vmatpush1.msra.mxu0 0.0
        %952 = vmatprep.subr.mxu0 0.0
        %953 = vmatpush1.msra.mxu0 0.0
        %954 = vmatprep.subr.mxu0 0.0
        %955 = vmatpush1.msra.mxu0 0.0
        %956 = vmatprep.subr.mxu0 0.0
        %957 = vmatpush1.msra.mxu0 0.0
        %958 = vmatprep.subr.mxu0 0.0
        %959 = vmatpush1.msra.mxu0 0.0
        %960 = vmatprep.subr.mxu0 0.0
        %961 = vmatpush1.msra.mxu0 0.0
        %962 = vmatprep.subr.mxu0 0.0
        %963 = vmatpush1.msra.mxu0 0.0
        %964 = vmatprep.subr.mxu0 0.0
        %965 = vmatpush1.msra.mxu0 0.0
        %966 = vmatprep.subr.mxu0 0.0
        %967 = vmatpush1.msra.mxu0 0.0
        %968 = vmatprep.subr.mxu0 0.0
        %969 = vmatpush1.msra.mxu0 0.0
        %970 = vmatprep.subr.mxu0 0.0
        %971 = vmatpush1.msra.mxu0 0.0
        %972 = vmatprep.subr.mxu0 0.0
        %973 = vmatpush1.msra.mxu0 0.0
        %974 = vmatprep.subr.mxu0 0.0
        %975 = vmatpush1.msra.mxu0 0.0
        %976 = vmatprep.subr.mxu0 0.0
        %977 = vmatpush1.msra.mxu0 0.0
        %978 = vmatprep.subr.mxu0 0.0
        %979 = vmatpush1.msra.mxu0 0.0
        %980 = vmatprep.mubr.f32.mxu0 0.0
        %981 = vmatmul.mubr.f32.gmra.mrb[0].mxu0 %v914
        %v982 = vpop.f32.mrb[0].mxu0
        %v983 = vadd.f32 %v910, %v982
        %v984 = vpop.f32.mrb[0].mxu0
        %985 = vdwg.mxu0
        %v986 = vmax.f32 %v983, 0.0
        %vm987 = vcmask 605184
        %988 = vst.msk [vmem:[#allocation4] sm:$0xff] %vm987, 0.0
        %vm989 = vcmask 523264
        %990 = vst.msk [vmem:[#allocation4] sm:$0xff] %vm989, %v986
        %v991 = vld [vmem:[#allocation4] sm:$0xff]
        %992 = vrot.lane.b32.xlu0 %v852, 1
        %v993 = vpop.permute.xlu0 %992
        %v995 = vmul.f32 %v991, %v993
        %996 = vrot.lane.b32.xlu0 %v852, 9
        %v997 = vpop.permute.xlu0 %996
        %v999 = vmul.f32 %v991, %v997
        %v1000 = vld [vmem:[%s9] sm:$0x3]
        %s1001 = sld [smem:[#allocation5]]
        %v1002 = vstv %s1001
        %v1003 = vrcp.pop %v1002
        %s1004 = vtos %v1003
        %v1005 = vld [vmem:[%s8] sm:$0x3]
        %1007 = vset.pattern.permute.xlu0 0
        %1008 = vperm.xlu0 %1007, %v1000
        %v1009 = vpop.permute.xlu0 %1008
        %vm1011 = vcmask 64512
        %v1013 = vsel %vm1011, %v1005, 0
        %1015 = vmatprep.subr.mxu0 0.0
        %1016 = vmatpush1.msra.mxu0 %v986
        %1017 = vmatprep.subr.mxu0 0.0
        %1018 = vmatpush1.msra.mxu0 0.0
        %1019 = vmatprep.subr.mxu0 0.0
        %1020 = vmatpush1.msra.mxu0 0.0
        %1021 = vmatprep.subr.mxu0 0.0
        %1022 = vmatpush1.msra.mxu0 0.0
        %1023 = vmatprep.subr.mxu0 0.0
        %1024 = vmatpush1.msra.mxu0 0.0
        %1025 = vmatprep.subr.mxu0 0.0
        %1026 = vmatpush1.msra.mxu0 0.0
        %1027 = vmatprep.subr.mxu0 0.0
        %1028 = vmatpush1.msra.mxu0 0.0
        %1029 = vmatprep.subr.mxu0 0.0
        %1030 = vmatpush1.msra.mxu0 0.0
        %1031 = vmatprep.subr.mxu0 0.0
        %1032 = vmatpush1.msra.mxu0 0.0
        %1033 = vmatprep.subr.mxu0 0.0
        %1034 = vmatpush1.msra.mxu0 0.0
        %1035 = vmatprep.subr.mxu0 0.0
        %1036 = vmatpush1.msra.mxu0 0.0
        %1037 = vmatprep.subr.mxu0 0.0
        %1038 = vmatpush1.msra.mxu0 0.0
        %1039 = vmatprep.subr.mxu0 0.0
        %1040 = vmatpush1.msra.mxu0 0.0
        %1041 = vmatprep.subr.mxu0 0.0
        %1042 = vmatpush1.msra.mxu0 0.0
        %1043 = vmatprep.subr.mxu0 0.0
        %1044 = vmatpush1.msra.mxu0 0.0
        %1045 = vmatprep.subr.mxu0 0.0
        %1046 = vmatpush1.msra.mxu0 0.0
        %1047 = vmatprep.subr.mxu0 0.0
        %1048 = vmatpush1.msra.mxu0 0.0
        %1049 = vmatprep.subr.mxu0 0.0
        %1050 = vmatpush1.msra.mxu0 0.0
        %1051 = vmatprep.subr.mxu0 0.0
        %1052 = vmatpush1.msra.mxu0 0.0
        %1053 = vmatprep.subr.mxu0 0.0
        %1054 = vmatpush1.msra.mxu0 0.0
        %1055 = vmatprep.subr.mxu0 0.0
        %1056 = vmatpush1.msra.mxu0 0.0
        %1057 = vmatprep.subr.mxu0 0.0
        %1058 = vmatpush1.msra.mxu0 0.0
        %1059 = vmatprep.subr.mxu0 0.0
        %1060 = vmatpush1.msra.mxu0 0.0
        %1061 = vmatprep.subr.mxu0 0.0
        %1062 = vmatpush1.msra.mxu0 0.0
        %1063 = vmatprep.subr.mxu0 0.0
        %1064 = vmatpush1.msra.mxu0 0.0
        %1065 = vmatprep.subr.mxu0 0.0
        %1066 = vmatpush1.msra.mxu0 0.0
        %1067 = vmatprep.subr.mxu0 0.0
        %1068 = vmatpush1.msra.mxu0 0.0
        %1069 = vmatprep.subr.mxu0 0.0
        %1070 = vmatpush1.msra.mxu0 0.0
        %1071 = vmatprep.subr.mxu0 0.0
        %1072 = vmatpush1.msra.mxu0 0.0
        %1073 = vmatprep.subr.mxu0 0.0
        %1074 = vmatpush1.msra.mxu0 0.0
        %1075 = vmatprep.subr.mxu0 0.0
        %1076 = vmatpush1.msra.mxu0 0.0
        %1077 = vmatprep.subr.mxu0 0.0
        %1078 = vmatpush1.msra.mxu0 0.0
        %1079 = vmatprep.mubr.f32.mxu0 0.0
        %1080 = vmatmul.mubr.f32.gmra.mrb[0].mxu0 %v1013
        %v1081 = vpop.f32.mrb[0].mxu0
        %v1082 = vadd.f32 %v1009, %v1081
        %v1083 = vpop.f32.mrb[0].mxu0
        %1084 = vdwg.mxu0
        %v1085 = vld [vmem:[%s432] sm:$0x3]
        %v1086 = vlog2.pop %v1085
        %v1087 = vmul.f32 %v1086, 0.6931472
        %v1088 = vsub.f32 0.0, %v1087
        %v1089 = vlog2.pop %v1088
        %v1090 = vmul.f32 %v1089, 0.6931472
        %v1091 = vsub.f32 0.0, %v1090
        %v1092 = vadd.f32 %v1082, %v1091
        %v1093 = vstv %s1004
        %v1094 = vmul.f32 %v1092, %v1093
        %v1096 = vrot.slane %v1094, 7
        %v1098 = vsub.f32 %v1094, %v1096
        %v1099 = vsub.f32 0.0, %v1098
        %v1100 = vmul.f32 %v1099, 1.442695
        %v1101 = vpow.pop %v1100
        %v1102 = vadd.f32 %v1101, 1.0
        %v1103 = vrcp.pop %v1102
        %v1104 = vmul.f32 1.0, %v1103
        %v1105 = vmul.f32 %v1098, 1.442695
        %v1106 = vpow.pop %v1105
        %v1107 = vadd.f32 %v1106, 1.0
        %v1108 = vrcp.pop %v1107
        %v1109 = vmul.f32 1.0, %v1108
        %v1111 = vrot.slane %v1109, 1
        %vm1113 = vcmask 1040384
        %v1114 = vsel %vm1113, %v1111, %v1104
        %vm1115 = vcmask 517120
        %1116 = vst.msk [vmem:[%s422] sm:$0x3] %vm1115, %v1114
        %1118 = vrot.lane.b32.xlu0 %v986, 1
        %v1119 = vpop.permute.xlu0 %1118
        %v1120 = vld [vmem:[%s8] sm:$0x3]
        %1122 = vrot.lane.b32.xlu0 %v1120, 120
        %v1123 = vpop.permute.xlu0 %1122
        %1125 = vrot.lane.b32.xlu0 %v995, 127
        %v1126 = vpop.permute.xlu0 %1125
        %1127 = vrot.lane.b32.xlu0 %v1119, 127
        %v1128 = vpop.permute.xlu0 %1127
        %v1131 = vsel %vm492, %v1123, 0
        %1133 = vmatprep.subr.mxu0 0.0
        %1134 = vmatpush1.msra.mxu0 %v1126
        %1135 = vmatprep.subr.mxu0 0.0
        %1136 = vmatpush1.msra.mxu0 %v1128
        %1137 = vmatprep.subr.mxu0 0.0
        %1138 = vmatpush1.msra.mxu0 0.0
        %1139 = vmatprep.subr.mxu0 0.0
        %1140 = vmatpush1.msra.mxu0 0.0
        %1141 = vmatprep.subr.mxu0 0.0
        %1142 = vmatpush1.msra.mxu0 0.0
        %1143 = vmatprep.subr.mxu0 0.0
        %1144 = vmatpush1.msra.mxu0 0.0
        %1145 = vmatprep.subr.mxu0 0.0
        %1146 = vmatpush1.msra.mxu0 0.0
        %1147 = vmatprep.subr.mxu0 0.0
        %1148 = vmatpush1.msra.mxu0 0.0
        %1149 = vmatprep.subr.mxu0 0.0
        %1150 = vmatpush1.msra.mxu0 0.0
        %1151 = vmatprep.subr.mxu0 0.0
        %1152 = vmatpush1.msra.mxu0 0.0
        %1153 = vmatprep.subr.mxu0 0.0
        %1154 = vmatpush1.msra.mxu0 0.0
        %1155 = vmatprep.subr.mxu0 0.0
        %1156 = vmatpush1.msra.mxu0 0.0
        %1157 = vmatprep.subr.mxu0 0.0
        %1158 = vmatpush1.msra.mxu0 0.0
        %1159 = vmatprep.subr.mxu0 0.0
        %1160 = vmatpush1.msra.mxu0 0.0
        %1161 = vmatprep.subr.mxu0 0.0
        %1162 = vmatpush1.msra.mxu0 0.0
        %1163 = vmatprep.subr.mxu0 0.0
        %1164 = vmatpush1.msra.mxu0 0.0
        %1165 = vmatprep.subr.mxu0 0.0
        %1166 = vmatpush1.msra.mxu0 0.0
        %1167 = vmatprep.subr.mxu0 0.0
        %1168 = vmatpush1.msra.mxu0 0.0
        %1169 = vmatprep.subr.mxu0 0.0
        %1170 = vmatpush1.msra.mxu0 0.0
        %1171 = vmatprep.subr.mxu0 0.0
        %1172 = vmatpush1.msra.mxu0 0.0
        %1173 = vmatprep.subr.mxu0 0.0
        %1174 = vmatpush1.msra.mxu0 0.0
        %1175 = vmatprep.subr.mxu0 0.0
        %1176 = vmatpush1.msra.mxu0 0.0
        %1177 = vmatprep.subr.mxu0 0.0
        %1178 = vmatpush1.msra.mxu0 0.0
        %1179 = vmatprep.subr.mxu0 0.0
        %1180 = vmatpush1.msra.mxu0 0.0
        %1181 = vmatprep.subr.mxu0 0.0
        %1182 = vmatpush1.msra.mxu0 0.0
        %1183 = vmatprep.subr.mxu0 0.0
        %1184 = vmatpush1.msra.mxu0 0.0
        %1185 = vmatprep.subr.mxu0 0.0
        %1186 = vmatpush1.msra.mxu0 0.0
        %1187 = vmatprep.subr.mxu0 0.0
        %1188 = vmatpush1.msra.mxu0 0.0
        %1189 = vmatprep.subr.mxu0 0.0
        %1190 = vmatpush1.msra.mxu0 0.0
        %1191 = vmatprep.subr.mxu0 0.0
        %1192 = vmatpush1.msra.mxu0 0.0
        %1193 = vmatprep.subr.mxu0 0.0
        %1194 = vmatpush1.msra.mxu0 0.0
        %1195 = vmatprep.subr.mxu0 0.0
        %1196 = vmatpush1.msra.mxu0 0.0
        %1197 = vmatprep.mubr.f32.mxu0 0.0
        %1198 = vmatmul.mubr.f32.gmra.mrb[0].mxu0 %v1131
        %v1199 = vpop.f32.mrb[0].mxu0
        %v1200 = vadd.f32 %v1009, %v1199
        %v1201 = vpop.f32.mrb[0].mxu0
        %1202 = vdwg.mxu0
        %s1203 = scalar_lea.vmem %s432, 2
        %v1204 = vld [vmem:[%s1203] sm:$0x3]
        %v1205 = vlog2.pop %v1204
        %v1206 = vmul.f32 %v1205, 0.6931472
        %v1207 = vsub.f32 0.0, %v1206
        %v1208 = vlog2.pop %v1207
        %v1209 = vmul.f32 %v1208, 0.6931472
        %v1210 = vsub.f32 0.0, %v1209
        %v1211 = vadd.f32 %v1200, %v1210
        %v1212 = vmul.f32 %v1211, %v1093
        %v1214 = vrot.slane %v1212, 7
        %v1216 = vsub.f32 %v1212, %v1214
        %v1217 = vsub.f32 0.0, %v1216
        %v1218 = vmul.f32 %v1217, 1.442695
        %v1219 = vpow.pop %v1218
        %v1220 = vadd.f32 %v1219, 1.0
        %v1221 = vrcp.pop %v1220
        %v1222 = vmul.f32 1.0, %v1221
        %v1223 = vmul.f32 %v1216, 1.442695
        %v1224 = vpow.pop %v1223
        %v1225 = vadd.f32 %v1224, 1.0
        %v1226 = vrcp.pop %v1225
        %v1227 = vmul.f32 1.0, %v1226
        %v1229 = vrot.slane %v1227, 1
        %v1231 = vsel %vm1113, %v1229, %v1222
        %s1232 = scalar_lea.vmem %s422, 2 [#allocation6]
        %1233 = vst.msk [vmem:[%s1232] sm:$0x3] %vm1115, %v1231
        %1234 = vrot.lane.b32.xlu0 %v986, 8
        %v1235 = vpop.permute.xlu0 %1234
        %v1236 = vld [vmem:[%s8] sm:$0x3]
        %1238 = vrot.lane.b32.xlu0 %v1236, 104
        %v1239 = vpop.permute.xlu0 %1238
        %1241 = vrot.lane.b32.xlu0 %v991, 120
        %v1242 = vpop.permute.xlu0 %1241
        %1243 = vrot.lane.b32.xlu0 %v1235, 120
        %v1244 = vpop.permute.xlu0 %1243
        %v1247 = vsel %vm492, %v1239, 0
        %1249 = vmatprep.subr.mxu0 0.0
        %1250 = vmatpush1.msra.mxu0 %v1242
        %1251 = vmatprep.subr.mxu0 0.0
        %1252 = vmatpush1.msra.mxu0 %v1244
        %1253 = vmatprep.subr.mxu0 0.0
        %1254 = vmatpush1.msra.mxu0 0.0
        %1255 = vmatprep.subr.mxu0 0.0
        %1256 = vmatpush1.msra.mxu0 0.0
        %1257 = vmatprep.subr.mxu0 0.0
        %1258 = vmatpush1.msra.mxu0 0.0
        %1259 = vmatprep.subr.mxu0 0.0
        %1260 = vmatpush1.msra.mxu0 0.0
        %1261 = vmatprep.subr.mxu0 0.0
        %1262 = vmatpush1.msra.mxu0 0.0
        %1263 = vmatprep.subr.mxu0 0.0
        %1264 = vmatpush1.msra.mxu0 0.0
        %1265 = vmatprep.subr.mxu0 0.0
        %1266 = vmatpush1.msra.mxu0 0.0
        %1267 = vmatprep.subr.mxu0 0.0
        %1268 = vmatpush1.msra.mxu0 0.0
        %1269 = vmatprep.subr.mxu0 0.0
        %1270 = vmatpush1.msra.mxu0 0.0
        %1271 = vmatprep.subr.mxu0 0.0
        %1272 = vmatpush1.msra.mxu0 0.0
        %1273 = vmatprep.subr.mxu0 0.0
        %1274 = vmatpush1.msra.mxu0 0.0
        %1275 = vmatprep.subr.mxu0 0.0
        %1276 = vmatpush1.msra.mxu0 0.0
        %1277 = vmatprep.subr.mxu0 0.0
        %1278 = vmatpush1.msra.mxu0 0.0
        %1279 = vmatprep.subr.mxu0 0.0
        %1280 = vmatpush1.msra.mxu0 0.0
        %1281 = vmatprep.subr.mxu0 0.0
        %1282 = vmatpush1.msra.mxu0 0.0
        %1283 = vmatprep.subr.mxu0 0.0
        %1284 = vmatpush1.msra.mxu0 0.0
        %1285 = vmatprep.subr.mxu0 0.0
        %1286 = vmatpush1.msra.mxu0 0.0
        %1287 = vmatprep.subr.mxu0 0.0
        %1288 = vmatpush1.msra.mxu0 0.0
        %1289 = vmatprep.subr.mxu0 0.0
        %1290 = vmatpush1.msra.mxu0 0.0
        %1291 = vmatprep.subr.mxu0 0.0
        %1292 = vmatpush1.msra.mxu0 0.0
        %1293 = vmatprep.subr.mxu0 0.0
        %1294 = vmatpush1.msra.mxu0 0.0
        %1295 = vmatprep.subr.mxu0 0.0
        %1296 = vmatpush1.msra.mxu0 0.0
        %1297 = vmatprep.subr.mxu0 0.0
        %1298 = vmatpush1.msra.mxu0 0.0
        %1299 = vmatprep.subr.mxu0 0.0
        %1300 = vmatpush1.msra.mxu0 0.0
        %1301 = vmatprep.subr.mxu0 0.0
        %1302 = vmatpush1.msra.mxu0 0.0
        %1303 = vmatprep.subr.mxu0 0.0
        %1304 = vmatpush1.msra.mxu0 0.0
        %1305 = vmatprep.subr.mxu0 0.0
        %1306 = vmatpush1.msra.mxu0 0.0
        %1307 = vmatprep.subr.mxu0 0.0
        %1308 = vmatpush1.msra.mxu0 0.0
        %1309 = vmatprep.subr.mxu0 0.0
        %1310 = vmatpush1.msra.mxu0 0.0
        %1311 = vmatprep.subr.mxu0 0.0
        %1312 = vmatpush1.msra.mxu0 0.0
        %1313 = vmatprep.mubr.f32.mxu0 0.0
        %1314 = vmatmul.mubr.f32.gmra.mrb[0].mxu0 %v1247
        %v1315 = vpop.f32.mrb[0].mxu0
        %v1316 = vadd.f32 %v1009, %v1315
        %v1317 = vpop.f32.mrb[0].mxu0
        %1318 = vdwg.mxu0
        %s1319 = scalar_lea.vmem %s432, 4
        %v1320 = vld [vmem:[%s1319] sm:$0x3]
        %v1321 = vlog2.pop %v1320
        %v1322 = vmul.f32 %v1321, 0.6931472
        %v1323 = vsub.f32 0.0, %v1322
        %v1324 = vlog2.pop %v1323
        %v1325 = vmul.f32 %v1324, 0.6931472
        %v1326 = vsub.f32 0.0, %v1325
        %v1327 = vadd.f32 %v1316, %v1326
        %v1328 = vmul.f32 %v1327, %v1093
        %v1330 = vrot.slane %v1328, 7
        %v1332 = vsub.f32 %v1328, %v1330
        %v1333 = vsub.f32 0.0, %v1332
        %v1334 = vmul.f32 %v1333, 1.442695
        %v1335 = vpow.pop %v1334
        %v1336 = vadd.f32 %v1335, 1.0
        %v1337 = vrcp.pop %v1336
        %v1338 = vmul.f32 1.0, %v1337
        %v1339 = vmul.f32 %v1332, 1.442695
        %v1340 = vpow.pop %v1339
        %v1341 = vadd.f32 %v1340, 1.0
        %v1342 = vrcp.pop %v1341
        %v1343 = vmul.f32 1.0, %v1342
        %v1345 = vrot.slane %v1343, 1
        %v1347 = vsel %vm1113, %v1345, %v1338
        %s1348 = scalar_lea.vmem %s422, 4 [#allocation6]
        %1349 = vst.msk [vmem:[%s1348] sm:$0x3] %vm1115, %v1347
        %1350 = vrot.lane.b32.xlu0 %v991, 1
        %v1351 = vpop.permute.xlu0 %1350
        %1352 = vrot.lane.b32.xlu0 %v995, 8
        %v1353 = vpop.permute.xlu0 %1352
        %1354 = vrot.lane.b32.xlu0 %v986, 9
        %v1355 = vpop.permute.xlu0 %1354
        %v1356 = vld [vmem:[%s8] sm:$0x3]
        %1358 = vrot.lane.b32.xlu0 %v1356, 88
        %v1359 = vpop.permute.xlu0 %1358
        %1361 = vrot.lane.b32.xlu0 %v999, 119
        %v1362 = vpop.permute.xlu0 %1361
        %1363 = vrot.lane.b32.xlu0 %v1351, 119
        %v1364 = vpop.permute.xlu0 %1363
        %1365 = vrot.lane.b32.xlu0 %v1353, 119
        %v1366 = vpop.permute.xlu0 %1365
        %1367 = vrot.lane.b32.xlu0 %v1355, 119
        %v1368 = vpop.permute.xlu0 %1367
        %v1373 = vsel %vm510, %v1359, 0
        %1375 = vmatprep.subr.mxu0 0.0
        %1376 = vmatpush1.msra.mxu0 %v1362
        %1377 = vmatprep.subr.mxu0 0.0
        %1378 = vmatpush1.msra.mxu0 %v1364
        %1379 = vmatprep.subr.mxu0 0.0
        %1380 = vmatpush1.msra.mxu0 %v1366
        %1381 = vmatprep.subr.mxu0 0.0
        %1382 = vmatpush1.msra.mxu0 %v1368
        %1383 = vmatprep.subr.mxu0 0.0
        %1384 = vmatpush1.msra.mxu0 0.0
        %1385 = vmatprep.subr.mxu0 0.0
        %1386 = vmatpush1.msra.mxu0 0.0
        %1387 = vmatprep.subr.mxu0 0.0
        %1388 = vmatpush1.msra.mxu0 0.0
        %1389 = vmatprep.subr.mxu0 0.0
        %1390 = vmatpush1.msra.mxu0 0.0
        %1391 = vmatprep.subr.mxu0 0.0
        %1392 = vmatpush1.msra.mxu0 0.0
        %1393 = vmatprep.subr.mxu0 0.0
        %1394 = vmatpush1.msra.mxu0 0.0
        %1395 = vmatprep.subr.mxu0 0.0
        %1396 = vmatpush1.msra.mxu0 0.0
        %1397 = vmatprep.subr.mxu0 0.0
        %1398 = vmatpush1.msra.mxu0 0.0
        %1399 = vmatprep.subr.mxu0 0.0
        %1400 = vmatpush1.msra.mxu0 0.0
        %1401 = vmatprep.subr.mxu0 0.0
        %1402 = vmatpush1.msra.mxu0 0.0
        %1403 = vmatprep.subr.mxu0 0.0
        %1404 = vmatpush1.msra.mxu0 0.0
        %1405 = vmatprep.subr.mxu0 0.0
        %1406 = vmatpush1.msra.mxu0 0.0
        %1407 = vmatprep.subr.mxu0 0.0
        %1408 = vmatpush1.msra.mxu0 0.0
        %1409 = vmatprep.subr.mxu0 0.0
        %1410 = vmatpush1.msra.mxu0 0.0
        %1411 = vmatprep.subr.mxu0 0.0
        %1412 = vmatpush1.msra.mxu0 0.0
        %1413 = vmatprep.subr.mxu0 0.0
        %1414 = vmatpush1.msra.mxu0 0.0
        %1415 = vmatprep.subr.mxu0 0.0
        %1416 = vmatpush1.msra.mxu0 0.0
        %1417 = vmatprep.subr.mxu0 0.0
        %1418 = vmatpush1.msra.mxu0 0.0
        %1419 = vmatprep.subr.mxu0 0.0
        %1420 = vmatpush1.msra.mxu0 0.0
        %1421 = vmatprep.subr.mxu0 0.0
        %1422 = vmatpush1.msra.mxu0 0.0
        %1423 = vmatprep.subr.mxu0 0.0
        %1424 = vmatpush1.msra.mxu0 0.0
        %1425 = vmatprep.subr.mxu0 0.0
        %1426 = vmatpush1.msra.mxu0 0.0
        %1427 = vmatprep.subr.mxu0 0.0
        %1428 = vmatpush1.msra.mxu0 0.0
        %1429 = vmatprep.subr.mxu0 0.0
        %1430 = vmatpush1.msra.mxu0 0.0
        %1431 = vmatprep.subr.mxu0 0.0
        %1432 = vmatpush1.msra.mxu0 0.0
        %1433 = vmatprep.subr.mxu0 0.0
        %1434 = vmatpush1.msra.mxu0 0.0
        %1435 = vmatprep.subr.mxu0 0.0
        %1436 = vmatpush1.msra.mxu0 0.0
        %1437 = vmatprep.subr.mxu0 0.0
        %1438 = vmatpush1.msra.mxu0 0.0
        %1439 = vmatprep.mubr.f32.mxu0 0.0
        %1440 = vmatmul.mubr.f32.gmra.mrb[0].mxu0 %v1373
        %v1441 = vpop.f32.mrb[0].mxu0
        %v1442 = vadd.f32 %v1009, %v1441
        %v1443 = vpop.f32.mrb[0].mxu0
        %1444 = vdwg.mxu0
        %s1445 = scalar_lea.vmem %s432, 6
        %v1446 = vld [vmem:[%s1445] sm:$0x3]
        %v1447 = vlog2.pop %v1446
        %v1448 = vmul.f32 %v1447, 0.6931472
        %v1449 = vsub.f32 0.0, %v1448
        %v1450 = vlog2.pop %v1449
        %v1451 = vmul.f32 %v1450, 0.6931472
        %v1452 = vsub.f32 0.0, %v1451
        %v1453 = vadd.f32 %v1442, %v1452
        %v1454 = vmul.f32 %v1453, %v1093
        %v1456 = vrot.slane %v1454, 7
        %v1458 = vsub.f32 %v1454, %v1456
        %v1459 = vsub.f32 0.0, %v1458
        %v1460 = vmul.f32 %v1459, 1.442695
        %v1461 = vpow.pop %v1460
        %v1462 = vadd.f32 %v1461, 1.0
        %v1463 = vrcp.pop %v1462
        %v1464 = vmul.f32 1.0, %v1463
        %v1465 = vmul.f32 %v1458, 1.442695
        %v1466 = vpow.pop %v1465
        %v1467 = vadd.f32 %v1466, 1.0
        %v1468 = vrcp.pop %v1467
        %v1469 = vmul.f32 1.0, %v1468
        %v1471 = vrot.slane %v1469, 1
        %v1473 = vsel %vm1113, %v1471, %v1464
        %s1474 = scalar_lea.vmem %s422, 6 [#allocation6]
        %1475 = vst.msk [vmem:[%s1474] sm:$0x3] %vm1115, %v1473
        %s1476 = sand.u32 %s297, 1
        %s1477 = scalar_lea.sflag [#allocation7], %s1476
        %s1478 = sand.u32 %s297, 1
        %s1479 = smul.addr %s1478, 8
        %s1480 = scalar_lea.vmem [#allocation6], %s1479
        // Predicated region
        $region69: #{tpu_custom_call.1} parent=67 // pred_check
          %p1481 = pneg %p307
        $region70: #{tpu_custom_call.1} parent=67 // pred_check_branch
          %1483 = sbr.rel (%p1481) target = $region72
        $region71: #{tpu_custom_call.1} parent=67 // pred_region
          %s1485 = ssub.s32 128, 128
          %1486 = vsyncadd %s1477, %s1485
          %s1487 = smul.addr %s27, 4
          %s1488 = smul.addr %s1487, 32
          %s1489 = scalar_lea.hbm %s12, %s1488
          %s1490 = sshll.u32 %s1480, 4
          %s1491 = int_to_ptr.vmem [resolvable:$true] %s1490
          %1496 = dma.vmem_to_hbm [thread:$0]  %s1491, 128, %s1489, %s1477, 32, 32, 2
        $region72: #{tpu_custom_call.1} parent=67 // pred_fallthru
          _
      $region68: #{tpu_custom_call.1} parent=5 // pred_fallthru
        _
      %p1497 = scmp.le.s32.totalorder 2, %s22
      // Predicated region
      $region73: #{tpu_custom_call.1} parent=5 // pred_check
        %p1498 = pneg %p1497
      $region74: #{tpu_custom_call.1} parent=5 // pred_check_branch
        %1500 = sbr.rel (%p1498) target = $region76
      $region75: #{tpu_custom_call.1} parent=5 // pred_region
        %s1501 = ssub.s32 %s22, 2
        // Predicated region
        $region77: #{tpu_custom_call.1} parent=75 // pred_check
          %p1502 = pneg %p313
        $region78: #{tpu_custom_call.1} parent=75 // pred_check_branch
          %1504 = sbr.rel (%p1502) target = $region80
        $region79: #{tpu_custom_call.1} parent=75 // pred_region
          %s1505 = sand.u32 %s298, 1
          %s1506 = scalar_lea.sflag [#allocation7], %s1505
          %s1507 = sand.u32 %s298, 1
          %s1508 = smul.addr %s1507, 8
          %s1509 = scalar_lea.vmem [#allocation6], %s1508
          %1510 = dma.done %s1506, 128
        $region80: #{tpu_custom_call.1} parent=75 // pred_fallthru
          _
      $region76: #{tpu_custom_call.1} parent=5 // pred_fallthru
        _
    $region6: #{tpu_custom_call.1} parent=1 // loop_footer
      %s26 = sadd.s32 1, %s22
    $region7: #{tpu_custom_call.1} parent=1 // loop_footer_branch
      %21 = sbr.rel target = $region3
    $region8: #{tpu_custom_call.1} parent=1 // loop_exit
      _
    %1511 = vsyncpa [#allocation7], 1
    %s1512 = scalar_lea.sflag [#allocation7], 1
    %1513 = vsyncpa %s1512, 1

</llo_original>
